<compile_context>
chip_gen: v6e
topology: v6e:2x2x1
jax: 0.10.0
libtpu: 0.0.40
codegen_flags: <defaults>
</compile_context>

<pallas_src>
import functools

import numpy as np
import jax
import jax.numpy as jnp
from jax.experimental import pallas as pl
from jax.experimental.pallas import tpu as pltpu


# ----------------------------------------------------------------------------
# glue: math helpers (plain JAX)
# ----------------------------------------------------------------------------
def so3_exp_map(log_rot):
    """Rodrigues formula (equivalent of pytorch3d.so3_exp_map for batch=1)."""
    w = jnp.asarray(log_rot, jnp.float32).reshape(3)
    theta = jnp.sqrt(jnp.sum(w * w) + 1e-12)
    k = w / theta
    K = jnp.array([[0.0, -k[2], k[1]],
                   [k[2], 0.0, -k[0]],
                   [-k[1], k[0], 0.0]], jnp.float32)
    return jnp.eye(3, dtype=jnp.float32) + jnp.sin(theta) * K + (1.0 - jnp.cos(theta)) * (K @ K)


def get_sphere_intersection(cam_loc, ray_directions, r=1.0):
    """Near/far ray / bounding-sphere intersections. cam_loc (B,3), rays (B,N,3)."""
    rcd = jnp.einsum('bnd,bd->bn', ray_directions, cam_loc)                  # (B,N)
    under = rcd ** 2 - (jnp.sum(cam_loc ** 2, axis=-1)[:, None] - r ** 2)    # (B,N)
    mask = under > 0
    sq = jnp.sqrt(jnp.where(mask, under, 0.0))
    si = jnp.stack([-sq, sq], axis=-1) - rcd[..., None]                      # (B,N,2)
    si = jnp.where(mask[..., None], si, 0.0)
    si = jnp.maximum(si, 0.0)
    return si, mask


def init_sdf_params(key, in_dim=3, hidden=32, out_dim=4):
    """Deterministic synthetic SDF MLP: 3 -> H -> H -> F (ReLU)."""
    k1, k2, k3, k4, k5, k6 = jax.random.split(key, 6)
    s1, s2 = 1.0 / np.sqrt(in_dim), 1.0 / np.sqrt(hidden)
    return (jax.random.normal(k1, (in_dim, hidden), jnp.float32) * s1,
            jax.random.normal(k2, (1, hidden), jnp.float32) * 0.1,
            jax.random.normal(k3, (hidden, hidden), jnp.float32) * s2,
            jax.random.normal(k4, (1, hidden), jnp.float32) * 0.1,
            jax.random.normal(k5, (hidden, out_dim), jnp.float32) * s2,
            jax.random.normal(k6, (1, out_dim), jnp.float32) * 0.1)


# ----------------------------------------------------------------------------
# Pallas kernel: one tile = tile_rays rays x n_steps samples = S lane columns
# feature-major layout: (features on sublanes, samples on lanes), step-major.
# ----------------------------------------------------------------------------
def _ray_marcher_kernel(perray_ref, jitter_ref,
                        w1_ref, b1_ref, w2_ref, b2_ref, w3_ref, b3_ref,
                        out_ref, *, n_steps):
    n = n_steps
    F = w3_ref.shape[0]

    per_ray = perray_ref[...]                            # (8, R) = [cam|ray|near|far]

    def rep(x):
        # (C, R) -> (C, n*R), step-major: lane-aligned whole-block concat
        # (each copy is a full 128-lane group -> layout-free, no relayout).
        return jnp.concatenate([x] * n, axis=1)

    cam = rep(per_ray[0:3, :])                           # (3, S)
    ray = rep(per_ray[3:6, :])                           # (3, S)
    near = rep(per_ray[6:7, :])                          # (1, S)
    span = rep(per_ray[7:8, :] - per_ray[6:7, :])        # (1, S)   far - near

    # steps = near + span * (linspace + t_rand/n); linspace folded into jitter.
    steps = near + span * jitter_ref[...]                # (1, S)
    pts = cam + steps * ray                              # (3, S) points on rays

    # SDF MLP on the MXU (weights pre-transposed; pose fold applied on host).
    # Default MXU precision (bf16 passes, f32 accumulation) — validated vs ref.
    h = jnp.maximum(jnp.dot(w1_ref[...], pts,
                            preferred_element_type=jnp.float32) + b1_ref[...], 0.0)
    h = jnp.maximum(jnp.dot(w2_ref[...], h,
                            preferred_element_type=jnp.float32) + b2_ref[...], 0.0)
    net = jnp.dot(w3_ref[...], h,
                  preferred_element_type=jnp.float32) + b3_ref[...]           # (F, S)

    # packed lane-dense output slab [pts | net | steps]
    out_ref[0:3, :] = pts
    out_ref[3:3 + F, :] = net
    out_ref[3 + F:4 + F, :] = steps


# ----------------------------------------------------------------------------
# glue: compaction + packing (host side, concrete arrays)
# ----------------------------------------------------------------------------
def _prepare_inputs(cam_loc, ray_directions, key, pose_params,
                    object_bounding_sphere, n_steps, tile_rays):
    B, N, _ = ray_directions.shape
    assert B == 1, "code path (like the torch module) assumes batch_size == 1"
    si, mask = get_sphere_intersection(cam_loc, ray_directions, r=object_bounding_sphere)
    min_dis, max_dis = si[..., 0], si[..., 1]

    # TODO(synk): boolean-mask compaction (dynamic-shape gather) has no clean
    # Pallas/TPU equivalent; done on host with concrete arrays (device sync).
    mask_np = np.asarray(mask).reshape(-1)
    n_mask = int(mask_np.sum())
    assert n_mask > 0

    cam_rep = np.broadcast_to(np.asarray(cam_loc)[:, None, :], (B, N, 3)).reshape(-1, 3)
    mask_points = cam_rep[mask_np].astype(np.float32)
    mask_rays = np.asarray(ray_directions).reshape(-1, 3)[mask_np].astype(np.float32)
    mask_min = np.asarray(min_dis).reshape(-1)[mask_np][:, None].astype(np.float32)
    mask_max = np.asarray(max_dis).reshape(-1)[mask_np][:, None].astype(np.float32)

    pad = (-n_mask) % tile_rays
    npad = n_mask + pad
    ntiles = npad // tile_rays

    # single packed per-ray block: [cam(3) | ray(3) | near(1) | far(1)]
    perray = np.concatenate([mask_points, mask_rays, mask_min, mask_max],
                            axis=1).astype(np.float32)               # (n_mask, 8)
    if pad:
        perray = np.concatenate([perray, np.zeros((pad, 8), np.float32)], axis=0)

    n = n_steps
    lin = np.linspace(0.0, 1.0, n, dtype=np.float32)                 # (n,)
    # TODO(synk): torch.rand stream is not reproducible in JAX; use jax.random
    # (in-kernel pltpu.prng_* would remove this HBM stream but break ref parity).
    t_rand = jax.random.uniform(key, (npad, n), jnp.float32) - 0.5   # (npad, n)
    # fold linspace into the per-sample stream: steps = near + span * jitter
    jitter_rm = jnp.asarray(lin)[None, :] + t_rand * (1.0 / float(n))   # ray-major
    # kernel stream: step-major / ray-minor inside each ray tile, samples on lanes
    jitter_km = (jitter_rm.reshape(ntiles, tile_rays, n)
                 .transpose(0, 2, 1).reshape(1, npad * n))

    lin_rm = jnp.asarray(np.tile(lin, npad)[:, None])                # (npad*n, 1)
    trand_rm = t_rand.reshape(npad * n, 1)                           # (npad*n, 1)

    if pose_params is not None:
        w, t, s = pose_params
        rot = (jnp.float32(s) * so3_exp_map(w).T).astype(jnp.float32)   # applied as p @ rot
        trans = jnp.asarray(t, jnp.float32).reshape(1, 3)
    else:
        rot = jnp.eye(3, dtype=jnp.float32)
        trans = jnp.zeros((1, 3), jnp.float32)

    return dict(perray=jnp.asarray(perray), perray_T=jnp.asarray(perray.T),
                jitter_km=jitter_km, lin=lin_rm, trand=trand_rm,
                rot=rot, trans=trans, n_mask=n_mask, npad=npad, ntiles=ntiles)


# ----------------------------------------------------------------------------
# wrapper: RayMarcher.forward equivalent (samples=None path)
# returns (sampled_points, net_values, steps) like the torch module
# ----------------------------------------------------------------------------
def ray_marcher_forward(sdf_params, cam_loc, ray_directions, key, pose_params=None,
                        object_bounding_sphere=1.0, n_steps=16, tile_rays=128):
    assert tile_rays % 128 == 0, "tile_rays must be a multiple of the 128-lane width"
    p = _prepare_inputs(cam_loc, ray_directions, key, pose_params,
                        object_bounding_sphere, n_steps, tile_rays)
    w1, b1, w2, b2, w3, b3 = sdf_params
    hi = jax.lax.Precision.HIGHEST
    # fold pose transform (q = pts @ rot + trans) into the first MLP layer,
    # then transpose all weights for the feature-major (lane-dense) layout.
    w1t = jnp.dot(p['rot'], w1, precision=hi).T                      # (H, 3)
    b1t = (b1 + jnp.dot(p['trans'], w1, precision=hi)).T             # (H, 1)
    w2t, b2t = w2.T, b2.T                                            # (H, H), (H, 1)
    w3t, b3t = w3.T, b3.T                                            # (F, H), (F, 1)

    H, F = w1.shape[1], w3.shape[1]
    n, n_mask, npad, ntiles = n_steps, p['n_mask'], p['npad'], p['ntiles']
    S = tile_rays * n                                                # samples per tile
    W = 3 + F + 1                                                    # packed out rows

    const = lambda shp: pl.BlockSpec(shp, lambda i: (0, 0))          # resident weights
    kernel = functools.partial(_ray_marcher_kernel, n_steps=n)

    out = pl.pallas_call(
        kernel,
        out_shape=jax.ShapeDtypeStruct((W, npad * n), jnp.float32),
        grid_spec=pltpu.PrefetchScalarGridSpec(
            num_scalar_prefetch=0,
            grid=(ntiles,),
            in_specs=[pl.BlockSpec((8, tile_rays), lambda i: (0, i)),   # packed per-ray
                      pl.BlockSpec((1, S), lambda i: (0, i)),           # per-sample jitter
                      # constant index_map -> weight blocks stay resident across steps
                      const((H, 3)), const((H, 1)),
                      const((H, H)), const((H, 1)),
                      const((F, H)), const((F, 1))],
            out_specs=pl.BlockSpec((W, S), lambda i: (0, i)),           # packed [pts|net|steps]
        ),
        compiler_params=pltpu.CompilerParams(
            dimension_semantics=("parallel",),
            vmem_limit_bytes=32 * 1024 * 1024),
    )(p['perray_T'], p['jitter_km'], w1t, b1t, w2t, b2t, w3t, b3t)

    # undo the (feature-major, step-major) kernel layout -> ray-major rows
    out = out.reshape(W, ntiles, n, tile_rays)
    out = jnp.transpose(out, (1, 3, 2, 0)).reshape(npad, n, W)[:n_mask]  # (n_mask, n, W)
    sampled_points = out[..., 0:3].reshape(n_mask * n, 3)            # (n_mask*n, 3)
    net_values = out[..., 3:3 + F]                                   # (n_mask, n, F)
    steps = out[..., 3 + F]                                          # (n_mask, n)
    return sampled_points, net_values, steps


# pure-JAX reference (same glue, same RNG, torch-style formulas, HIGHEST precision)
def ray_marcher_reference(sdf_params, cam_loc, ray_directions, key, pose_params=None,
                          object_bounding_sphere=1.0, n_steps=16, tile_rays=128):
    p = _prepare_inputs(cam_loc, ray_directions, key, pose_params,
                        object_bounding_sphere, n_steps, tile_rays)
    hi = jax.lax.Precision.HIGHEST
    w1, b1, w2, b2, w3, b3 = sdf_params
    n, n_mask = n_steps, p['n_mask']
    perray = p['perray']
    cam = jnp.repeat(perray[:, 0:3], n, axis=0)
    ray = jnp.repeat(perray[:, 3:6], n, axis=0)
    mind = jnp.repeat(perray[:, 6:7], n, axis=0)
    maxd = jnp.repeat(perray[:, 7:8], n, axis=0)
    span = maxd - mind
    steps = p['lin'] * span + mind + p['trand'] * (span / float(n))
    pts = cam + steps * ray
    q = jnp.dot(pts, p['rot'], precision=hi) + p['trans']
    h = jnp.maximum(jnp.dot(q, w1, precision=hi) + b1, 0.0)
    h = jnp.maximum(jnp.dot(h, w2, precision=hi) + b2, 0.0)
    out = jnp.dot(h, w3, precision=hi) + b3
    F = w3.shape[1]
    valid = n_mask * n
    return (pts[:valid],
            out[:valid].reshape(n_mask, n, F),
            steps[:valid].reshape(n_mask, n))


if __name__ == "__main__":
    key = jax.random.PRNGKey(0)
    k_dirs, k_rand, k_sdf = jax.random.split(key, 3)

    B, N = 1, 64
    n_steps, hidden, out_feats = 16, 32, 4

    cam_loc = jnp.array([[0.0, 0.0, 2.5]], jnp.float32)                    # (1, 3)
    dxy = jax.random.uniform(k_dirs, (N, 2), jnp.float32, minval=-0.8, maxval=0.8)
    dirs = jnp.concatenate([dxy, -jnp.ones((N, 1), jnp.float32)], axis=-1)
    dirs = dirs.at[0].set(jnp.array([0.0, 0.0, -1.0], jnp.float32))        # guarantee >=1 hit
    dirs = dirs / jnp.linalg.norm(dirs, axis=-1, keepdims=True)
    ray_directions = dirs[None]                                            # (1, 64, 3)

    sdf_params = init_sdf_params(k_sdf, 3, hidden, out_feats)
    pose_params = (jnp.array([[0.05, -0.02, 0.03]], jnp.float32),          # axis-angle
                   jnp.array([0.01, -0.03, 0.02], jnp.float32),            # translation
                   jnp.float32(1.05))                                      # scale

    pts, net, steps = ray_marcher_forward(
        sdf_params, cam_loc, ray_directions, k_rand, pose_params=pose_params,
        object_bounding_sphere=1.0, n_steps=n_steps, tile_rays=128)
    jax.block_until_ready((pts, net, steps))

    pts_r, net_r, steps_r = ray_marcher_reference(
        sdf_params, cam_loc, ray_directions, k_rand, pose_params=pose_params,
        object_bounding_sphere=1.0, n_steps=n_steps, tile_rays=128)

    assert pts.shape == pts_r.shape and net.shape == net_r.shape and steps.shape == steps_r.shape
    assert np.allclose(np.asarray(pts), np.asarray(pts_r), atol=1e-4, rtol=1e-4)
    assert np.allclose(np.asarray(steps), np.asarray(steps_r), atol=1e-4, rtol=1e-4)
    # net tolerance accounts for default-precision (bf16-pass) MXU matmuls
    assert np.allclose(np.asarray(net), np.asarray(net_r), atol=5e-2, rtol=5e-2)
    print("KERNEL_OK")
</pallas_src>

<mosaic_0001>
module attributes {stable_mosaic.version = 11 : i64} {
  func.func @_ray_marcher_kernel(%arg0: i32, %arg1: memref<8x128xf32, #tpu.memory_space<vmem>>, %arg2: memref<1x2048xf32, #tpu.memory_space<vmem>>, %arg3: memref<32x3xf32, #tpu.memory_space<vmem>>, %arg4: memref<32x1xf32, #tpu.memory_space<vmem>>, %arg5: memref<32x32xf32, #tpu.memory_space<vmem>>, %arg6: memref<32x1xf32, #tpu.memory_space<vmem>>, %arg7: memref<4x32xf32, #tpu.memory_space<vmem>>, %arg8: memref<4x1xf32, #tpu.memory_space<vmem>>, %arg9: memref<8x2048xf32, #tpu.memory_space<vmem>>) attributes {dimension_semantics = [#tpu.dimension_semantics<parallel>], iteration_bounds = array<i64: 1>, scalar_prefetch = 0 : i64, scratch_operands = 0 : i64, tpu.core_type = #tpu.core_type<tc>, window_params = [{transform_indices = @transform_0, window_bounds = array<i64: 8, 128>}, {transform_indices = @transform_1, window_bounds = array<i64: 1, 2048>}, {pipeline_mode = #tpu.pipeline_mode<synchronous>, transform_indices = @transform_2, window_bounds = array<i64: 32, 3>}, {pipeline_mode = #tpu.pipeline_mode<synchronous>, transform_indices = @transform_3, window_bounds = array<i64: 32, 1>}, {pipeline_mode = #tpu.pipeline_mode<synchronous>, transform_indices = @transform_4, window_bounds = array<i64: 32, 32>}, {pipeline_mode = #tpu.pipeline_mode<synchronous>, transform_indices = @transform_5, window_bounds = array<i64: 32, 1>}, {pipeline_mode = #tpu.pipeline_mode<synchronous>, transform_indices = @transform_6, window_bounds = array<i64: 4, 32>}, {pipeline_mode = #tpu.pipeline_mode<synchronous>, transform_indices = @transform_7, window_bounds = array<i64: 4, 1>}, {transform_indices = @transform_8, window_bounds = array<i64: 8, 2048>}]} {
    %c0 = arith.constant 0 : index
    %c0_0 = arith.constant 0 : index
    %0 = vector.load %arg1[%c0, %c0_0] : memref<8x128xf32, #tpu.memory_space<vmem>>, vector<8x128xf32>
    %1 = vector.extract_strided_slice %0 {offsets = [0, 0], sizes = [3, 128], strides = [1, 1]} : vector<8x128xf32> to vector<3x128xf32>
    %2 = tpu.concatenate %1, %1, %1, %1, %1, %1, %1, %1, %1, %1, %1, %1, %1, %1, %1, %1 in 1 : vector<3x128xf32>, vector<3x128xf32>, vector<3x128xf32>, vector<3x128xf32>, vector<3x128xf32>, vector<3x128xf32>, vector<3x128xf32>, vector<3x128xf32>, vector<3x128xf32>, vector<3x128xf32>, vector<3x128xf32>, vector<3x128xf32>, vector<3x128xf32>, vector<3x128xf32>, vector<3x128xf32>, vector<3x128xf32> -> vector<3x2048xf32>
    %3 = vector.extract_strided_slice %0 {offsets = [3, 0], sizes = [3, 128], strides = [1, 1]} : vector<8x128xf32> to vector<3x128xf32>
    %4 = tpu.concatenate %3, %3, %3, %3, %3, %3, %3, %3, %3, %3, %3, %3, %3, %3, %3, %3 in 1 : vector<3x128xf32>, vector<3x128xf32>, vector<3x128xf32>, vector<3x128xf32>, vector<3x128xf32>, vector<3x128xf32>, vector<3x128xf32>, vector<3x128xf32>, vector<3x128xf32>, vector<3x128xf32>, vector<3x128xf32>, vector<3x128xf32>, vector<3x128xf32>, vector<3x128xf32>, vector<3x128xf32>, vector<3x128xf32> -> vector<3x2048xf32>
    %5 = vector.extract_strided_slice %0 {offsets = [6, 0], sizes = [1, 128], strides = [1, 1]} : vector<8x128xf32> to vector<1x128xf32>
    %6 = tpu.concatenate %5, %5, %5, %5, %5, %5, %5, %5, %5, %5, %5, %5, %5, %5, %5, %5 in 1 : vector<1x128xf32>, vector<1x128xf32>, vector<1x128xf32>, vector<1x128xf32>, vector<1x128xf32>, vector<1x128xf32>, vector<1x128xf32>, vector<1x128xf32>, vector<1x128xf32>, vector<1x128xf32>, vector<1x128xf32>, vector<1x128xf32>, vector<1x128xf32>, vector<1x128xf32>, vector<1x128xf32>, vector<1x128xf32> -> vector<1x2048xf32>
    %7 = vector.extract_strided_slice %0 {offsets = [7, 0], sizes = [1, 128], strides = [1, 1]} : vector<8x128xf32> to vector<1x128xf32>
    %8 = vector.extract_strided_slice %0 {offsets = [6, 0], sizes = [1, 128], strides = [1, 1]} : vector<8x128xf32> to vector<1x128xf32>
    %9 = arith.subf %7, %8 : vector<1x128xf32>
    %10 = tpu.concatenate %9, %9, %9, %9, %9, %9, %9, %9, %9, %9, %9, %9, %9, %9, %9, %9 in 1 : vector<1x128xf32>, vector<1x128xf32>, vector<1x128xf32>, vector<1x128xf32>, vector<1x128xf32>, vector<1x128xf32>, vector<1x128xf32>, vector<1x128xf32>, vector<1x128xf32>, vector<1x128xf32>, vector<1x128xf32>, vector<1x128xf32>, vector<1x128xf32>, vector<1x128xf32>, vector<1x128xf32>, vector<1x128xf32> -> vector<1x2048xf32>
    %c0_1 = arith.constant 0 : index
    %c0_2 = arith.constant 0 : index
    %11 = vector.load %arg2[%c0_1, %c0_2] : memref<1x2048xf32, #tpu.memory_space<vmem>>, vector<1x2048xf32>
    %12 = arith.mulf %10, %11 : vector<1x2048xf32>
    %13 = arith.addf %6, %12 : vector<1x2048xf32>
    %14 = vector.broadcast %13 : vector<1x2048xf32> to vector<3x2048xf32>
    %15 = arith.mulf %14, %4 : vector<3x2048xf32>
    %16 = arith.addf %2, %15 : vector<3x2048xf32>
    %c0_3 = arith.constant 0 : index
    %c0_4 = arith.constant 0 : index
    %17 = vector.load %arg3[%c0_3, %c0_4] : memref<32x3xf32, #tpu.memory_space<vmem>>, vector<32x3xf32>
    %cst = arith.constant dense<0.000000e+00> : vector<32x2048xf32>
    %18 = tpu.matmul %17, %16, %cst {dimension_numbers = #tpu.dot_dimension_numbers<[1], [0], [0], [1], [0, 0, 1, 1], [], []>} : vector<32x3xf32>, vector<3x2048xf32>, vector<32x2048xf32> -> vector<32x2048xf32>
    %c0_5 = arith.constant 0 : index
    %c0_6 = arith.constant 0 : index
    %19 = vector.load %arg4[%c0_5, %c0_6] : memref<32x1xf32, #tpu.memory_space<vmem>>, vector<32x1xf32>
    %20 = vector.broadcast %19 : vector<32x1xf32> to vector<32x2048xf32>
    %21 = arith.addf %18, %20 : vector<32x2048xf32>
    %cst_7 = arith.constant 0.000000e+00 : f32
    %22 = vector.broadcast %cst_7 : f32 to vector<32x2048xf32>
    %23 = arith.maximumf %21, %22 : vector<32x2048xf32>
    %c0_8 = arith.constant 0 : index
    %c0_9 = arith.constant 0 : index
    %24 = vector.load %arg5[%c0_8, %c0_9] : memref<32x32xf32, #tpu.memory_space<vmem>>, vector<32x32xf32>
    %cst_10 = arith.constant dense<0.000000e+00> : vector<32x2048xf32>
    %25 = tpu.matmul %24, %23, %cst_10 {dimension_numbers = #tpu.dot_dimension_numbers<[1], [0], [0], [1], [0, 0, 1, 1], [], []>} : vector<32x32xf32>, vector<32x2048xf32>, vector<32x2048xf32> -> vector<32x2048xf32>
    %c0_11 = arith.constant 0 : index
    %c0_12 = arith.constant 0 : index
    %26 = vector.load %arg6[%c0_11, %c0_12] : memref<32x1xf32, #tpu.memory_space<vmem>>, vector<32x1xf32>
    %27 = vector.broadcast %26 : vector<32x1xf32> to vector<32x2048xf32>
    %28 = arith.addf %25, %27 : vector<32x2048xf32>
    %cst_13 = arith.constant 0.000000e+00 : f32
    %29 = vector.broadcast %cst_13 : f32 to vector<32x2048xf32>
    %30 = arith.maximumf %28, %29 : vector<32x2048xf32>
    %c0_14 = arith.constant 0 : index
    %c0_15 = arith.constant 0 : index
    %31 = vector.load %arg7[%c0_14, %c0_15] : memref<4x32xf32, #tpu.memory_space<vmem>>, vector<4x32xf32>
    %cst_16 = arith.constant dense<0.000000e+00> : vector<4x2048xf32>
    %32 = tpu.matmul %31, %30, %cst_16 {dimension_numbers = #tpu.dot_dimension_numbers<[1], [0], [0], [1], [0, 0, 1, 1], [], []>} : vector<4x32xf32>, vector<32x2048xf32>, vector<4x2048xf32> -> vector<4x2048xf32>
    %c0_17 = arith.constant 0 : index
    %c0_18 = arith.constant 0 : index
    %33 = vector.load %arg8[%c0_17, %c0_18] : memref<4x1xf32, #tpu.memory_space<vmem>>, vector<4x1xf32>
    %34 = vector.broadcast %33 : vector<4x1xf32> to vector<4x2048xf32>
    %35 = arith.addf %32, %34 : vector<4x2048xf32>
    %c0_19 = arith.constant 0 : index
    %c0_20 = arith.constant 0 : index
    %36 = vector.load %arg9[%c0_19, %c0_20] : memref<8x2048xf32, #tpu.memory_space<vmem>>, vector<3x2048xf32>
    tpu.vector_store %arg9[%c0_19, %c0_20], %16 {strides = array<i32>} : memref<8x2048xf32, #tpu.memory_space<vmem>>, vector<3x2048xf32>,
    %c3 = arith.constant 3 : index
    %c0_21 = arith.constant 0 : index
    %37 = vector.load %arg9[%c3, %c0_21] : memref<8x2048xf32, #tpu.memory_space<vmem>>, vector<4x2048xf32>
    tpu.vector_store %arg9[%c3, %c0_21], %35 {strides = array<i32>} : memref<8x2048xf32, #tpu.memory_space<vmem>>, vector<4x2048xf32>,
    %c7 = arith.constant 7 : index
    %c0_22 = arith.constant 0 : index
    %38 = vector.load %arg9[%c7, %c0_22] : memref<8x2048xf32, #tpu.memory_space<vmem>>, vector<1x2048xf32>
    tpu.vector_store %arg9[%c7, %c0_22], %13 {strides = array<i32>} : memref<8x2048xf32, #tpu.memory_space<vmem>>, vector<1x2048xf32>,
    return
  }
  func.func @transform_0(%arg0: i32) -> (i32, i32) {
    %c0_i32 = arith.constant 0 : i32
    %c0_i32_0 = arith.constant 0 : i32
    return %c0_i32, %arg0 : i32, i32
  }
  func.func @transform_1(%arg0: i32) -> (i32, i32) {
    %c0_i32 = arith.constant 0 : i32
    %c0_i32_0 = arith.constant 0 : i32
    return %c0_i32, %arg0 : i32, i32
  }
  func.func @transform_2(%arg0: i32) -> (i32, i32) {
    %c0_i32 = arith.constant 0 : i32
    %c0_i32_0 = arith.constant 0 : i32
    %c0_i32_1 = arith.constant 0 : i32
    return %c0_i32, %c0_i32_0 : i32, i32
  }
  func.func @transform_3(%arg0: i32) -> (i32, i32) {
    %c0_i32 = arith.constant 0 : i32
    %c0_i32_0 = arith.constant 0 : i32
    %c0_i32_1 = arith.constant 0 : i32
    return %c0_i32, %c0_i32_0 : i32, i32
  }
  func.func @transform_4(%arg0: i32) -> (i32, i32) {
    %c0_i32 = arith.constant 0 : i32
    %c0_i32_0 = arith.constant 0 : i32
    %c0_i32_1 = arith.constant 0 : i32
    return %c0_i32, %c0_i32_0 : i32, i32
  }
  func.func @transform_5(%arg0: i32) -> (i32, i32) {
    %c0_i32 = arith.constant 0 : i32
    %c0_i32_0 = arith.constant 0 : i32
    %c0_i32_1 = arith.constant 0 : i32
    return %c0_i32, %c0_i32_0 : i32, i32
  }
  func.func @transform_6(%arg0: i32) -> (i32, i32) {
    %c0_i32 = arith.constant 0 : i32
    %c0_i32_0 = arith.constant 0 : i32
    %c0_i32_1 = arith.constant 0 : i32
    return %c0_i32, %c0_i32_0 : i32, i32
  }
  func.func @transform_7(%arg0: i32) -> (i32, i32) {
    %c0_i32 = arith.constant 0 : i32
    %c0_i32_0 = arith.constant 0 : i32
    %c0_i32_1 = arith.constant 0 : i32
    return %c0_i32, %c0_i32_0 : i32, i32
  }
  func.func @transform_8(%arg0: i32) -> (i32, i32) {
    %c0_i32 = arith.constant 0 : i32
    %c0_i32_0 = arith.constant 0 : i32
    return %c0_i32, %arg0 : i32, i32
  }
}

</mosaic_0001>

<llo_original>
// kernel: tpu_custom_call.1
$region0: #{tpu_custom_call.1}
  #allocation0 [shape = 'u32[]', space=smem, size = 0x4, offset = 0x4, fixed_abs, tag = 'smem constant byte address 0x4 - core index']
  #allocation1 [shape = 'u32[144,128]{1,0:T(1,128)}', space=vmem, size = 0x12000, scoped, tag = 'internal scratch']
  %s0 = inlined_call_operand.vmem [shape: f32[8,128], index: 0, kind: input, shape index: {}]
  %s1 = inlined_call_operand.vmem [shape: f32[1,2048], index: 1, kind: input, shape index: {}]
  %s2 = inlined_call_operand.vmem [shape: f32[32,3], index: 2, kind: input, shape index: {}]
  %s3 = inlined_call_operand.vmem [shape: f32[32,1], index: 3, kind: input, shape index: {}]
  %s4 = inlined_call_operand.vmem [shape: f32[32,32], index: 4, kind: input, shape index: {}]
  %s5 = inlined_call_operand.vmem [shape: f32[32,1], index: 5, kind: input, shape index: {}]
  %s6 = inlined_call_operand.vmem [shape: f32[4,32], index: 6, kind: input, shape index: {}]
  %s7 = inlined_call_operand.vmem [shape: f32[4,1], index: 7, kind: input, shape index: {}]
  %s8 = inlined_call_operand.hbm [shape: f32[8,2048], index: 8, kind: output, shape index: {}]
  %s9 = sld [smem:[#allocation0]]
  $region42: #{tpu_custom_call.1} parent=0
    _
  %s11 = ssub.s32 1, %s9
  %s12 = scalar_select 0, %s11, %s9
  $region1: #{tpu_custom_call.1} parent=0
    #allocation2 [shape = 'u8[65536]{0}', space=vmem, size = 0x10000, scoped, tag = 'output window, operand 0, single buffered']
    #allocation3 [shape = 's32[1]{0}', space=sflag, size = 0x4, scoped, tag = 'scoped memory for tpu_custom_call.1']
    %13 = vsyncpa [#allocation3], 0
    // Predicated region
    $region2: #{tpu_custom_call.1} parent=1 // pred_check
      _
    $region3: #{tpu_custom_call.1} parent=1 // pred_check_branch
      %15 = sbr.rel (0) target = $region5
    $region4: #{tpu_custom_call.1} parent=1 // pred_region
      _
    $region5: #{tpu_custom_call.1} parent=1 // pred_fallthru
      _
    // Predicated region
    $region6: #{tpu_custom_call.1} parent=1 // pred_check
      _
    $region7: #{tpu_custom_call.1} parent=1 // pred_check_branch
      %17 = sbr.rel (0) target = $region9
    $region8: #{tpu_custom_call.1} parent=1 // pred_region
      _
    $region9: #{tpu_custom_call.1} parent=1 // pred_fallthru
      _
    // Predicated region
    $region10: #{tpu_custom_call.1} parent=1 // pred_check
      _
    $region11: #{tpu_custom_call.1} parent=1 // pred_check_branch
      %19 = sbr.rel (0) target = $region13
    $region12: #{tpu_custom_call.1} parent=1 // pred_region
      _
    $region13: #{tpu_custom_call.1} parent=1 // pred_fallthru
      _
    // Predicated region
    $region14: #{tpu_custom_call.1} parent=1 // pred_check
      _
    $region15: #{tpu_custom_call.1} parent=1 // pred_check_branch
      %21 = sbr.rel (0) target = $region17
    $region16: #{tpu_custom_call.1} parent=1 // pred_region
      _
    $region17: #{tpu_custom_call.1} parent=1 // pred_fallthru
      _
    // Predicated region
    $region18: #{tpu_custom_call.1} parent=1 // pred_check
      _
    $region19: #{tpu_custom_call.1} parent=1 // pred_check_branch
      %23 = sbr.rel (0) target = $region21
    $region20: #{tpu_custom_call.1} parent=1 // pred_region
      _
    $region21: #{tpu_custom_call.1} parent=1 // pred_fallthru
      _
    // Predicated region
    $region22: #{tpu_custom_call.1} parent=1 // pred_check
      _
    $region23: #{tpu_custom_call.1} parent=1 // pred_check_branch
      %25 = sbr.rel (0) target = $region25
    $region24: #{tpu_custom_call.1} parent=1 // pred_region
      _
    $region25: #{tpu_custom_call.1} parent=1 // pred_fallthru
      _
    // Predicated region
    $region26: #{tpu_custom_call.1} parent=1 // pred_check
      _
    $region27: #{tpu_custom_call.1} parent=1 // pred_check_branch
      %27 = sbr.rel (0) target = $region29
    $region28: #{tpu_custom_call.1} parent=1 // pred_region
      _
    $region29: #{tpu_custom_call.1} parent=1 // pred_fallthru
      _
    // Predicated region
    $region30: #{tpu_custom_call.1} parent=1 // pred_check
      _
    $region31: #{tpu_custom_call.1} parent=1 // pred_check_branch
      %29 = sbr.rel (0) target = $region33
    $region32: #{tpu_custom_call.1} parent=1 // pred_region
      _
    $region33: #{tpu_custom_call.1} parent=1 // pred_fallthru
      _
    %v30 = vld [vmem:[%s0] sm:$0xff]
    %v32 = vrot.slane %v30, 7
    %v34 = vsub.f32 %v30, %v32
    %v35 = vld [vmem:[%s1] sm:$0xff]
    %v36 = vld [vmem:[%s1 + $0x8] sm:$0xff]
    %v39 = vlaneseq
    %v40 = vshrl.u32 %v39, 7
    %v41 = vsub.s32 0, %v40
    %v42 = vrot.slane %v35, %v41
    %v43 = vlaneseq
    %v44 = vshrl.u32 %v43, 7
    %v45 = vsub.s32 1, %v44
    %v46 = vrot.slane %v35, %v45
    %v47 = vlaneseq
    %v48 = vshrl.u32 %v47, 7
    %v49 = vsub.s32 2, %v48
    %v50 = vrot.slane %v35, %v49
    %v51 = vlaneseq
    %v52 = vshrl.u32 %v51, 7
    %v53 = vsub.s32 3, %v52
    %v54 = vrot.slane %v35, %v53
    %v55 = vlaneseq
    %v56 = vshrl.u32 %v55, 7
    %v57 = vsub.s32 4, %v56
    %v58 = vrot.slane %v35, %v57
    %v59 = vlaneseq
    %v60 = vshrl.u32 %v59, 7
    %v61 = vsub.s32 5, %v60
    %v62 = vrot.slane %v35, %v61
    %v63 = vlaneseq
    %v64 = vshrl.u32 %v63, 7
    %v65 = vsub.s32 6, %v64
    %v66 = vrot.slane %v35, %v65
    %v67 = vlaneseq
    %v68 = vshrl.u32 %v67, 7
    %v69 = vsub.s32 7, %v68
    %v70 = vrot.slane %v35, %v69
    %v71 = vlaneseq
    %v72 = vshrl.u32 %v71, 7
    %v73 = vsub.s32 0, %v72
    %v74 = vrot.slane %v36, %v73
    %v75 = vlaneseq
    %v76 = vshrl.u32 %v75, 7
    %v77 = vsub.s32 1, %v76
    %v78 = vrot.slane %v36, %v77
    %v79 = vlaneseq
    %v80 = vshrl.u32 %v79, 7
    %v81 = vsub.s32 2, %v80
    %v82 = vrot.slane %v36, %v81
    %v83 = vlaneseq
    %v84 = vshrl.u32 %v83, 7
    %v85 = vsub.s32 3, %v84
    %v86 = vrot.slane %v36, %v85
    %v87 = vlaneseq
    %v88 = vshrl.u32 %v87, 7
    %v89 = vsub.s32 4, %v88
    %v90 = vrot.slane %v36, %v89
    %v91 = vlaneseq
    %v92 = vshrl.u32 %v91, 7
    %v93 = vsub.s32 5, %v92
    %v94 = vrot.slane %v36, %v93
    %v95 = vlaneseq
    %v96 = vshrl.u32 %v95, 7
    %v97 = vsub.s32 6, %v96
    %v98 = vrot.slane %v36, %v97
    %v99 = vlaneseq
    %v100 = vshrl.u32 %v99, 7
    %v101 = vsub.s32 7, %v100
    %v102 = vrot.slane %v36, %v101
    %v119 = vmul.f32 %v34, %v42
    %v120 = vmul.f32 %v34, %v46
    %v121 = vmul.f32 %v34, %v50
    %v122 = vmul.f32 %v34, %v54
    %v123 = vmul.f32 %v34, %v58
    %v124 = vmul.f32 %v34, %v62
    %v125 = vmul.f32 %v34, %v66
    %v126 = vmul.f32 %v34, %v70
    %v127 = vmul.f32 %v34, %v74
    %v128 = vmul.f32 %v34, %v78
    %v129 = vmul.f32 %v34, %v82
    %v130 = vmul.f32 %v34, %v86
    %v131 = vmul.f32 %v34, %v90
    %v132 = vmul.f32 %v34, %v94
    %v133 = vmul.f32 %v34, %v98
    %v134 = vmul.f32 %v34, %v102
    %v151 = vrot.slane %v119, 1
    %v152 = vrot.slane %v120, 1
    %v153 = vrot.slane %v121, 1
    %v154 = vrot.slane %v122, 1
    %v155 = vrot.slane %v123, 1
    %v156 = vrot.slane %v124, 1
    %v157 = vrot.slane %v125, 1
    %v158 = vrot.slane %v126, 1
    %v159 = vrot.slane %v127, 1
    %v160 = vrot.slane %v128, 1
    %v161 = vrot.slane %v129, 1
    %v162 = vrot.slane %v130, 1
    %v163 = vrot.slane %v131, 1
    %v164 = vrot.slane %v132, 1
    %v165 = vrot.slane %v133, 1
    %v166 = vrot.slane %v134, 1
    %v183 = vadd.f32 %v30, %v151
    %v184 = vadd.f32 %v30, %v152
    %v185 = vadd.f32 %v30, %v153
    %v186 = vadd.f32 %v30, %v154
    %v187 = vadd.f32 %v30, %v155
    %v188 = vadd.f32 %v30, %v156
    %v189 = vadd.f32 %v30, %v157
    %v190 = vadd.f32 %v30, %v158
    %v191 = vadd.f32 %v30, %v159
    %v192 = vadd.f32 %v30, %v160
    %v193 = vadd.f32 %v30, %v161
    %v194 = vadd.f32 %v30, %v162
    %v195 = vadd.f32 %v30, %v163
    %v196 = vadd.f32 %v30, %v164
    %v197 = vadd.f32 %v30, %v165
    %v198 = vadd.f32 %v30, %v166
    %v199 = vlaneseq
    %v200 = vshrl.u32 %v199, 7
    %v201 = vsub.s32 6, %v200
    %v202 = vrot.slane %v183, %v201
    %v203 = vlaneseq
    %v204 = vshrl.u32 %v203, 7
    %v205 = vsub.s32 6, %v204
    %v206 = vrot.slane %v184, %v205
    %v207 = vlaneseq
    %v208 = vshrl.u32 %v207, 7
    %v209 = vsub.s32 6, %v208
    %v210 = vrot.slane %v185, %v209
    %v211 = vlaneseq
    %v212 = vshrl.u32 %v211, 7
    %v213 = vsub.s32 6, %v212
    %v214 = vrot.slane %v186, %v213
    %v215 = vlaneseq
    %v216 = vshrl.u32 %v215, 7
    %v217 = vsub.s32 6, %v216
    %v218 = vrot.slane %v187, %v217
    %v219 = vlaneseq
    %v220 = vshrl.u32 %v219, 7
    %v221 = vsub.s32 6, %v220
    %v222 = vrot.slane %v188, %v221
    %v223 = vlaneseq
    %v224 = vshrl.u32 %v223, 7
    %v225 = vsub.s32 6, %v224
    %v226 = vrot.slane %v189, %v225
    %v227 = vlaneseq
    %v228 = vshrl.u32 %v227, 7
    %v229 = vsub.s32 6, %v228
    %v230 = vrot.slane %v190, %v229
    %v231 = vlaneseq
    %v232 = vshrl.u32 %v231, 7
    %v233 = vsub.s32 6, %v232
    %v234 = vrot.slane %v191, %v233
    %v235 = vlaneseq
    %v236 = vshrl.u32 %v235, 7
    %v237 = vsub.s32 6, %v236
    %v238 = vrot.slane %v192, %v237
    %v239 = vlaneseq
    %v240 = vshrl.u32 %v239, 7
    %v241 = vsub.s32 6, %v240
    %v242 = vrot.slane %v193, %v241
    %v243 = vlaneseq
    %v244 = vshrl.u32 %v243, 7
    %v245 = vsub.s32 6, %v244
    %v246 = vrot.slane %v194, %v245
    %v247 = vlaneseq
    %v248 = vshrl.u32 %v247, 7
    %v249 = vsub.s32 6, %v248
    %v250 = vrot.slane %v195, %v249
    %v251 = vlaneseq
    %v252 = vshrl.u32 %v251, 7
    %v253 = vsub.s32 6, %v252
    %v254 = vrot.slane %v196, %v253
    %v255 = vlaneseq
    %v256 = vshrl.u32 %v255, 7
    %v257 = vsub.s32 6, %v256
    %v258 = vrot.slane %v197, %v257
    %v259 = vlaneseq
    %v260 = vshrl.u32 %v259, 7
    %v261 = vsub.s32 6, %v260
    %v262 = vrot.slane %v198, %v261
    %v263 = vmul.f32 %v202, %v30
    %v264 = vmul.f32 %v206, %v30
    %v265 = vmul.f32 %v210, %v30
    %v266 = vmul.f32 %v214, %v30
    %v267 = vmul.f32 %v218, %v30
    %v268 = vmul.f32 %v222, %v30
    %v269 = vmul.f32 %v226, %v30
    %v270 = vmul.f32 %v230, %v30
    %v271 = vmul.f32 %v234, %v30
    %v272 = vmul.f32 %v238, %v30
    %v273 = vmul.f32 %v242, %v30
    %v274 = vmul.f32 %v246, %v30
    %v275 = vmul.f32 %v250, %v30
    %v276 = vmul.f32 %v254, %v30
    %v277 = vmul.f32 %v258, %v30
    %v278 = vmul.f32 %v262, %v30
    %v295 = vrot.slane %v263, 3
    %v296 = vrot.slane %v264, 3
    %v297 = vrot.slane %v265, 3
    %v298 = vrot.slane %v266, 3
    %v299 = vrot.slane %v267, 3
    %v300 = vrot.slane %v268, 3
    %v301 = vrot.slane %v269, 3
    %v302 = vrot.slane %v270, 3
    %v303 = vrot.slane %v271, 3
    %v304 = vrot.slane %v272, 3
    %v305 = vrot.slane %v273, 3
    %v306 = vrot.slane %v274, 3
    %v307 = vrot.slane %v275, 3
    %v308 = vrot.slane %v276, 3
    %v309 = vrot.slane %v277, 3
    %v310 = vrot.slane %v278, 3
    %v327 = vadd.f32 %v30, %v295
    %v328 = vadd.f32 %v30, %v296
    %v329 = vadd.f32 %v30, %v297
    %v330 = vadd.f32 %v30, %v298
    %v331 = vadd.f32 %v30, %v299
    %v332 = vadd.f32 %v30, %v300
    %v333 = vadd.f32 %v30, %v301
    %v334 = vadd.f32 %v30, %v302
    %v335 = vadd.f32 %v30, %v303
    %v336 = vadd.f32 %v30, %v304
    %v337 = vadd.f32 %v30, %v305
    %v338 = vadd.f32 %v30, %v306
    %v339 = vadd.f32 %v30, %v307
    %v340 = vadd.f32 %v30, %v308
    %v341 = vadd.f32 %v30, %v309
    %v342 = vadd.f32 %v30, %v310
    %v343 = vld [vmem:[%s2] sm:$0xff]
    %v344 = vld [vmem:[%s2 + $0x8] sm:$0xff]
    %v345 = vld [vmem:[%s2 + $0x10] sm:$0xff]
    %v346 = vld [vmem:[%s2 + $0x18] sm:$0xff]
    %v347 = vld [vmem:[%s3] sm:$0xff]
    %v348 = vld [vmem:[%s3 + $0x8] sm:$0xff]
    %v349 = vld [vmem:[%s3 + $0x10] sm:$0xff]
    %v350 = vld [vmem:[%s3 + $0x18] sm:$0xff]
    %352 = vset.pattern.permute.xlu0 0
    %353 = vperm.xlu0 %352, %v347
    %v354 = vpop.permute.xlu0 %353
    %357 = vset.pattern.permute.xlu0 0
    %358 = vperm.xlu0 %357, %v348
    %v359 = vpop.permute.xlu0 %358
    %362 = vset.pattern.permute.xlu0 0
    %363 = vperm.xlu0 %362, %v349
    %v364 = vpop.permute.xlu0 %363
    %367 = vset.pattern.permute.xlu0 0
    %368 = vperm.xlu0 %367, %v350
    %v369 = vpop.permute.xlu0 %368
    %vm371 = vcmask 23552
    %v373 = vsel %vm371, %v343, 0
    %v376 = vsel %vm371, %v344, 0
    %v379 = vsel %vm371, %v345, 0
    %v382 = vsel %vm371, %v346, 0
    %vm384 = vcmask 1042432
    %v386 = vsel %vm384, %v327, 0
    %v389 = vsel %vm384, %v328, 0
    %v392 = vsel %vm384, %v329, 0
    %v395 = vsel %vm384, %v330, 0
    %v398 = vsel %vm384, %v331, 0
    %v401 = vsel %vm384, %v332, 0
    %v404 = vsel %vm384, %v333, 0
    %v407 = vsel %vm384, %v334, 0
    %v410 = vsel %vm384, %v335, 0
    %v413 = vsel %vm384, %v336, 0
    %v416 = vsel %vm384, %v337, 0
    %v419 = vsel %vm384, %v338, 0
    %v422 = vsel %vm384, %v339, 0
    %v425 = vsel %vm384, %v340, 0
    %v428 = vsel %vm384, %v341, 0
    %v431 = vsel %vm384, %v342, 0
    %433 = vmatprep.subr.mxu0 0.0
    %434 = vmatpush1.msra.mxu0 0.0
    %435 = vmatprep.subr.mxu0 0.0
    %436 = vmatpush1.msra.mxu0 0.0
    %437 = vmatprep.subr.mxu0 0.0
    %438 = vmatpush1.msra.mxu0 0.0
    %439 = vmatprep.subr.mxu0 0.0
    %440 = vmatpush1.msra.mxu0 0.0
    %441 = vmatprep.subr.mxu0 0.0
    %442 = vmatpush1.msra.mxu0 0.0
    %443 = vmatprep.subr.mxu0 0.0
    %444 = vmatpush1.msra.mxu0 0.0
    %445 = vmatprep.subr.mxu0 0.0
    %446 = vmatpush1.msra.mxu0 0.0
    %447 = vmatprep.subr.mxu0 0.0
    %448 = vmatpush1.msra.mxu0 0.0
    %449 = vmatprep.subr.mxu0 0.0
    %450 = vmatpush1.msra.mxu0 0.0
    %451 = vmatprep.subr.mxu0 0.0
    %452 = vmatpush1.msra.mxu0 0.0
    %453 = vmatprep.subr.mxu0 0.0
    %454 = vmatpush1.msra.mxu0 0.0
    %455 = vmatprep.subr.mxu0 0.0
    %456 = vmatpush1.msra.mxu0 0.0
    %457 = vmatprep.subr.mxu0 0.0
    %458 = vmatpush1.msra.mxu0 0.0
    %459 = vmatprep.subr.mxu0 0.0
    %460 = vmatpush1.msra.mxu0 0.0
    %461 = vmatprep.subr.mxu0 0.0
    %462 = vmatpush1.msra.mxu0 0.0
    %463 = vmatprep.subr.mxu0 %v389
    %464 = vmatpush1.msra.mxu0 %v386
    %465 = vmatprep.subr.mxu0 0.0
    %466 = vmatpush2.msra.mxu0 0.0
    %467 = vmatprep.subr.mxu0 0.0
    %468 = vmatpush2.msra.mxu0 0.0
    %469 = vmatprep.subr.mxu0 0.0
    %470 = vmatpush2.msra.mxu0 0.0
    %471 = vmatprep.subr.mxu0 0.0
    %472 = vmatpush2.msra.mxu0 0.0
    %473 = vmatprep.subr.mxu0 0.0
    %474 = vmatpush2.msra.mxu0 0.0
    %475 = vmatprep.subr.mxu0 0.0
    %476 = vmatpush2.msra.mxu0 0.0
    %477 = vmatprep.subr.mxu0 0.0
    %478 = vmatpush2.msra.mxu0 0.0
    %479 = vmatprep.subr.mxu0 0.0
    %480 = vmatpush2.msra.mxu0 0.0
    %481 = vmatprep.subr.mxu0 0.0
    %482 = vmatpush2.msra.mxu0 0.0
    %483 = vmatprep.subr.mxu0 0.0
    %484 = vmatpush2.msra.mxu0 0.0
    %485 = vmatprep.subr.mxu0 0.0
    %486 = vmatpush2.msra.mxu0 0.0
    %487 = vmatprep.subr.mxu0 0.0
    %488 = vmatpush2.msra.mxu0 0.0
    %489 = vmatprep.subr.mxu0 0.0
    %490 = vmatpush2.msra.mxu0 0.0
    %491 = vmatprep.subr.mxu0 0.0
    %492 = vmatpush2.msra.mxu0 0.0
    %493 = vmatprep.subr.mxu0 0.0
    %494 = vmatpush2.msra.mxu0 0.0
    %495 = vmatprep.subr.mxu0 0.0
    %496 = vmatpush2.msra.mxu0 0.0
    %497 = vmatprep.mubr.f32.mxu0 0.0
    %498 = vmatmul.mubr.f32.gmra.mxu0 %v373
    %v499 = vpop.f32.mrf.mxu0
    %v500 = vadd.f32 %v354, %v499
    %v501 = vpop.f32.mrf.mxu0
    %v502 = vadd.f32 %v354, %v501
    %503 = vmatprep.mubr.f32.mxu0 0.0
    %504 = vmatmul.mubr.f32.gmra.mxu0 %v376
    %v505 = vpop.f32.mrf.mxu0
    %v506 = vadd.f32 %v359, %v505
    %v507 = vpop.f32.mrf.mxu0
    %v508 = vadd.f32 %v359, %v507
    %509 = vmatprep.mubr.f32.mxu0 0.0
    %510 = vmatmul.mubr.f32.gmra.mxu0 %v379
    %v511 = vpop.f32.mrf.mxu0
    %v512 = vadd.f32 %v364, %v511
    %v513 = vpop.f32.mrf.mxu0
    %v514 = vadd.f32 %v364, %v513
    %515 = vmatprep.mubr.f32.mxu0 0.0
    %516 = vmatmul.mubr.f32.gmra.mxu0 %v382
    %v517 = vpop.f32.mrf.mxu0
    %v518 = vadd.f32 %v369, %v517
    %v519 = vpop.f32.mrf.mxu0
    %v520 = vadd.f32 %v369, %v519
    %521 = vdwg.mxu0
    %522 = vmatprep.subr.mxu0 0.0
    %523 = vmatpush1.msra.mxu0 0.0
    %524 = vmatprep.subr.mxu0 0.0
    %525 = vmatpush1.msra.mxu0 0.0
    %526 = vmatprep.subr.mxu0 0.0
    %527 = vmatpush1.msra.mxu0 0.0
    %528 = vmatprep.subr.mxu0 0.0
    %529 = vmatpush1.msra.mxu0 0.0
    %530 = vmatprep.subr.mxu0 0.0
    %531 = vmatpush1.msra.mxu0 0.0
    %532 = vmatprep.subr.mxu0 0.0
    %533 = vmatpush1.msra.mxu0 0.0
    %534 = vmatprep.subr.mxu0 0.0
    %535 = vmatpush1.msra.mxu0 0.0
    %536 = vmatprep.subr.mxu0 0.0
    %537 = vmatpush1.msra.mxu0 0.0
    %538 = vmatprep.subr.mxu0 0.0
    %539 = vmatpush1.msra.mxu0 0.0
    %540 = vmatprep.subr.mxu0 0.0
    %541 = vmatpush1.msra.mxu0 0.0
    %542 = vmatprep.subr.mxu0 0.0
    %543 = vmatpush1.msra.mxu0 0.0
    %544 = vmatprep.subr.mxu0 0.0
    %545 = vmatpush1.msra.mxu0 0.0
    %546 = vmatprep.subr.mxu0 0.0
    %547 = vmatpush1.msra.mxu0 0.0
    %548 = vmatprep.subr.mxu0 0.0
    %549 = vmatpush1.msra.mxu0 0.0
    %550 = vmatprep.subr.mxu0 0.0
    %551 = vmatpush1.msra.mxu0 0.0
    %552 = vmatprep.subr.mxu0 %v395
    %553 = vmatpush1.msra.mxu0 %v392
    %554 = vmatprep.subr.mxu0 0.0
    %555 = vmatpush2.msra.mxu0 0.0
    %556 = vmatprep.subr.mxu0 0.0
    %557 = vmatpush2.msra.mxu0 0.0
    %558 = vmatprep.subr.mxu0 0.0
    %559 = vmatpush2.msra.mxu0 0.0
    %560 = vmatprep.subr.mxu0 0.0
    %561 = vmatpush2.msra.mxu0 0.0
    %562 = vmatprep.subr.mxu0 0.0
    %563 = vmatpush2.msra.mxu0 0.0
    %564 = vmatprep.subr.mxu0 0.0
    %565 = vmatpush2.msra.mxu0 0.0
    %566 = vmatprep.subr.mxu0 0.0
    %567 = vmatpush2.msra.mxu0 0.0
    %568 = vmatprep.subr.mxu0 0.0
    %569 = vmatpush2.msra.mxu0 0.0
    %570 = vmatprep.subr.mxu0 0.0
    %571 = vmatpush2.msra.mxu0 0.0
    %572 = vmatprep.subr.mxu0 0.0
    %573 = vmatpush2.msra.mxu0 0.0
    %574 = vmatprep.subr.mxu0 0.0
    %575 = vmatpush2.msra.mxu0 0.0
    %576 = vmatprep.subr.mxu0 0.0
    %577 = vmatpush2.msra.mxu0 0.0
    %578 = vmatprep.subr.mxu0 0.0
    %579 = vmatpush2.msra.mxu0 0.0
    %580 = vmatprep.subr.mxu0 0.0
    %581 = vmatpush2.msra.mxu0 0.0
    %582 = vmatprep.subr.mxu0 0.0
    %583 = vmatpush2.msra.mxu0 0.0
    %584 = vmatprep.subr.mxu0 0.0
    %585 = vmatpush2.msra.mxu0 0.0
    %586 = vmatprep.mubr.f32.mxu0 0.0
    %587 = vmatmul.mubr.f32.gmra.mxu0 %v373
    %v588 = vpop.f32.mrf.mxu0
    %v589 = vadd.f32 %v354, %v588
    %v590 = vpop.f32.mrf.mxu0
    %v591 = vadd.f32 %v354, %v590
    %592 = vmatprep.mubr.f32.mxu0 0.0
    %593 = vmatmul.mubr.f32.gmra.mxu0 %v376
    %v594 = vpop.f32.mrf.mxu0
    %v595 = vadd.f32 %v359, %v594
    %v596 = vpop.f32.mrf.mxu0
    %v597 = vadd.f32 %v359, %v596
    %598 = vmatprep.mubr.f32.mxu0 0.0
    %599 = vmatmul.mubr.f32.gmra.mxu0 %v379
    %v600 = vpop.f32.mrf.mxu0
    %v601 = vadd.f32 %v364, %v600
    %v602 = vpop.f32.mrf.mxu0
    %v603 = vadd.f32 %v364, %v602
    %604 = vmatprep.mubr.f32.mxu0 0.0
    %605 = vmatmul.mubr.f32.gmra.mxu0 %v382
    %v606 = vpop.f32.mrf.mxu0
    %v607 = vadd.f32 %v369, %v606
    %v608 = vpop.f32.mrf.mxu0
    %v609 = vadd.f32 %v369, %v608
    %610 = vdwg.mxu0
    %611 = vmatprep.subr.mxu0 0.0
    %612 = vmatpush1.msra.mxu0 0.0
    %613 = vmatprep.subr.mxu0 0.0
    %614 = vmatpush1.msra.mxu0 0.0
    %615 = vmatprep.subr.mxu0 0.0
    %616 = vmatpush1.msra.mxu0 0.0
    %617 = vmatprep.subr.mxu0 0.0
    %618 = vmatpush1.msra.mxu0 0.0
    %619 = vmatprep.subr.mxu0 0.0
    %620 = vmatpush1.msra.mxu0 0.0
    %621 = vmatprep.subr.mxu0 0.0
    %622 = vmatpush1.msra.mxu0 0.0
    %623 = vmatprep.subr.mxu0 0.0
    %624 = vmatpush1.msra.mxu0 0.0
    %625 = vmatprep.subr.mxu0 0.0
    %626 = vmatpush1.msra.mxu0 0.0
    %627 = vmatprep.subr.mxu0 0.0
    %628 = vmatpush1.msra.mxu0 0.0
    %629 = vmatprep.subr.mxu0 0.0
    %630 = vmatpush1.msra.mxu0 0.0
    %631 = vmatprep.subr.mxu0 0.0
    %632 = vmatpush1.msra.mxu0 0.0
    %633 = vmatprep.subr.mxu0 0.0
    %634 = vmatpush1.msra.mxu0 0.0
    %635 = vmatprep.subr.mxu0 0.0
    %636 = vmatpush1.msra.mxu0 0.0
    %637 = vmatprep.subr.mxu0 0.0
    %638 = vmatpush1.msra.mxu0 0.0
    %639 = vmatprep.subr.mxu0 0.0
    %640 = vmatpush1.msra.mxu0 0.0
    %641 = vmatprep.subr.mxu0 %v401
    %642 = vmatpush1.msra.mxu0 %v398
    %643 = vmatprep.subr.mxu0 0.0
    %644 = vmatpush2.msra.mxu0 0.0
    %645 = vmatprep.subr.mxu0 0.0
    %646 = vmatpush2.msra.mxu0 0.0
    %647 = vmatprep.subr.mxu0 0.0
    %648 = vmatpush2.msra.mxu0 0.0
    %649 = vmatprep.subr.mxu0 0.0
    %650 = vmatpush2.msra.mxu0 0.0
    %651 = vmatprep.subr.mxu0 0.0
    %652 = vmatpush2.msra.mxu0 0.0
    %653 = vmatprep.subr.mxu0 0.0
    %654 = vmatpush2.msra.mxu0 0.0
    %655 = vmatprep.subr.mxu0 0.0
    %656 = vmatpush2.msra.mxu0 0.0
    %657 = vmatprep.subr.mxu0 0.0
    %658 = vmatpush2.msra.mxu0 0.0
    %659 = vmatprep.subr.mxu0 0.0
    %660 = vmatpush2.msra.mxu0 0.0
    %661 = vmatprep.subr.mxu0 0.0
    %662 = vmatpush2.msra.mxu0 0.0
    %663 = vmatprep.subr.mxu0 0.0
    %664 = vmatpush2.msra.mxu0 0.0
    %665 = vmatprep.subr.mxu0 0.0
    %666 = vmatpush2.msra.mxu0 0.0
    %667 = vmatprep.subr.mxu0 0.0
    %668 = vmatpush2.msra.mxu0 0.0
    %669 = vmatprep.subr.mxu0 0.0
    %670 = vmatpush2.msra.mxu0 0.0
    %671 = vmatprep.subr.mxu0 0.0
    %672 = vmatpush2.msra.mxu0 0.0
    %673 = vmatprep.subr.mxu0 0.0
    %674 = vmatpush2.msra.mxu0 0.0
    %675 = vmatprep.mubr.f32.mxu0 0.0
    %676 = vmatmul.mubr.f32.gmra.mxu0 %v373
    %v677 = vpop.f32.mrf.mxu0
    %v678 = vadd.f32 %v354, %v677
    %v679 = vpop.f32.mrf.mxu0
    %v680 = vadd.f32 %v354, %v679
    %681 = vmatprep.mubr.f32.mxu0 0.0
    %682 = vmatmul.mubr.f32.gmra.mxu0 %v376
    %v683 = vpop.f32.mrf.mxu0
    %v684 = vadd.f32 %v359, %v683
    %v685 = vpop.f32.mrf.mxu0
    %v686 = vadd.f32 %v359, %v685
    %687 = vmatprep.mubr.f32.mxu0 0.0
    %688 = vmatmul.mubr.f32.gmra.mxu0 %v379
    %v689 = vpop.f32.mrf.mxu0
    %v690 = vadd.f32 %v364, %v689
    %v691 = vpop.f32.mrf.mxu0
    %v692 = vadd.f32 %v364, %v691
    %693 = vmatprep.mubr.f32.mxu0 0.0
    %694 = vmatmul.mubr.f32.gmra.mxu0 %v382
    %v695 = vpop.f32.mrf.mxu0
    %v696 = vadd.f32 %v369, %v695
    %v697 = vpop.f32.mrf.mxu0
    %v698 = vadd.f32 %v369, %v697
    %699 = vdwg.mxu0
    %700 = vmatprep.subr.mxu0 0.0
    %701 = vmatpush1.msra.mxu0 0.0
    %702 = vmatprep.subr.mxu0 0.0
    %703 = vmatpush1.msra.mxu0 0.0
    %704 = vmatprep.subr.mxu0 0.0
    %705 = vmatpush1.msra.mxu0 0.0
    %706 = vmatprep.subr.mxu0 0.0
    %707 = vmatpush1.msra.mxu0 0.0
    %708 = vmatprep.subr.mxu0 0.0
    %709 = vmatpush1.msra.mxu0 0.0
    %710 = vmatprep.subr.mxu0 0.0
    %711 = vmatpush1.msra.mxu0 0.0
    %712 = vmatprep.subr.mxu0 0.0
    %713 = vmatpush1.msra.mxu0 0.0
    %714 = vmatprep.subr.mxu0 0.0
    %715 = vmatpush1.msra.mxu0 0.0
    %716 = vmatprep.subr.mxu0 0.0
    %717 = vmatpush1.msra.mxu0 0.0
    %718 = vmatprep.subr.mxu0 0.0
    %719 = vmatpush1.msra.mxu0 0.0
    %720 = vmatprep.subr.mxu0 0.0
    %721 = vmatpush1.msra.mxu0 0.0
    %722 = vmatprep.subr.mxu0 0.0
    %723 = vmatpush1.msra.mxu0 0.0
    %724 = vmatprep.subr.mxu0 0.0
    %725 = vmatpush1.msra.mxu0 0.0
    %726 = vmatprep.subr.mxu0 0.0
    %727 = vmatpush1.msra.mxu0 0.0
    %728 = vmatprep.subr.mxu0 0.0
    %729 = vmatpush1.msra.mxu0 0.0
    %730 = vmatprep.subr.mxu0 %v407
    %731 = vmatpush1.msra.mxu0 %v404
    %732 = vmatprep.subr.mxu0 0.0
    %733 = vmatpush2.msra.mxu0 0.0
    %734 = vmatprep.subr.mxu0 0.0
    %735 = vmatpush2.msra.mxu0 0.0
    %736 = vmatprep.subr.mxu0 0.0
    %737 = vmatpush2.msra.mxu0 0.0
    %738 = vmatprep.subr.mxu0 0.0
    %739 = vmatpush2.msra.mxu0 0.0
    %740 = vmatprep.subr.mxu0 0.0
    %741 = vmatpush2.msra.mxu0 0.0
    %742 = vmatprep.subr.mxu0 0.0
    %743 = vmatpush2.msra.mxu0 0.0
    %744 = vmatprep.subr.mxu0 0.0
    %745 = vmatpush2.msra.mxu0 0.0
    %746 = vmatprep.subr.mxu0 0.0
    %747 = vmatpush2.msra.mxu0 0.0
    %748 = vmatprep.subr.mxu0 0.0
    %749 = vmatpush2.msra.mxu0 0.0
    %750 = vmatprep.subr.mxu0 0.0
    %751 = vmatpush2.msra.mxu0 0.0
    %752 = vmatprep.subr.mxu0 0.0
    %753 = vmatpush2.msra.mxu0 0.0
    %754 = vmatprep.subr.mxu0 0.0
    %755 = vmatpush2.msra.mxu0 0.0
    %756 = vmatprep.subr.mxu0 0.0
    %757 = vmatpush2.msra.mxu0 0.0
    %758 = vmatprep.subr.mxu0 0.0
    %759 = vmatpush2.msra.mxu0 0.0
    %760 = vmatprep.subr.mxu0 0.0
    %761 = vmatpush2.msra.mxu0 0.0
    %762 = vmatprep.subr.mxu0 0.0
    %763 = vmatpush2.msra.mxu0 0.0
    %764 = vmatprep.mubr.f32.mxu0 0.0
    %765 = vmatmul.mubr.f32.gmra.mxu0 %v373
    %v766 = vpop.f32.mrf.mxu0
    %v767 = vadd.f32 %v354, %v766
    %v768 = vpop.f32.mrf.mxu0
    %v769 = vadd.f32 %v354, %v768
    %770 = vmatprep.mubr.f32.mxu0 0.0
    %771 = vmatmul.mubr.f32.gmra.mxu0 %v376
    %v772 = vpop.f32.mrf.mxu0
    %v773 = vadd.f32 %v359, %v772
    %v774 = vpop.f32.mrf.mxu0
    %v775 = vadd.f32 %v359, %v774
    %776 = vmatprep.mubr.f32.mxu0 0.0
    %777 = vmatmul.mubr.f32.gmra.mxu0 %v379
    %v778 = vpop.f32.mrf.mxu0
    %v779 = vadd.f32 %v364, %v778
    %v780 = vpop.f32.mrf.mxu0
    %v781 = vadd.f32 %v364, %v780
    %782 = vmatprep.mubr.f32.mxu0 0.0
    %783 = vmatmul.mubr.f32.gmra.mxu0 %v382
    %v784 = vpop.f32.mrf.mxu0
    %v785 = vadd.f32 %v369, %v784
    %v786 = vpop.f32.mrf.mxu0
    %v787 = vadd.f32 %v369, %v786
    %788 = vdwg.mxu0
    %789 = vmatprep.subr.mxu0 0.0
    %790 = vmatpush1.msra.mxu0 0.0
    %791 = vmatprep.subr.mxu0 0.0
    %792 = vmatpush1.msra.mxu0 0.0
    %793 = vmatprep.subr.mxu0 0.0
    %794 = vmatpush1.msra.mxu0 0.0
    %795 = vmatprep.subr.mxu0 0.0
    %796 = vmatpush1.msra.mxu0 0.0
    %797 = vmatprep.subr.mxu0 0.0
    %798 = vmatpush1.msra.mxu0 0.0
    %799 = vmatprep.subr.mxu0 0.0
    %800 = vmatpush1.msra.mxu0 0.0
    %801 = vmatprep.subr.mxu0 0.0
    %802 = vmatpush1.msra.mxu0 0.0
    %803 = vmatprep.subr.mxu0 0.0
    %804 = vmatpush1.msra.mxu0 0.0
    %805 = vmatprep.subr.mxu0 0.0
    %806 = vmatpush1.msra.mxu0 0.0
    %807 = vmatprep.subr.mxu0 0.0
    %808 = vmatpush1.msra.mxu0 0.0
    %809 = vmatprep.subr.mxu0 0.0
    %810 = vmatpush1.msra.mxu0 0.0
    %811 = vmatprep.subr.mxu0 0.0
    %812 = vmatpush1.msra.mxu0 0.0
    %813 = vmatprep.subr.mxu0 0.0
    %814 = vmatpush1.msra.mxu0 0.0
    %815 = vmatprep.subr.mxu0 0.0
    %816 = vmatpush1.msra.mxu0 0.0
    %817 = vmatprep.subr.mxu0 0.0
    %818 = vmatpush1.msra.mxu0 0.0
    %819 = vmatprep.subr.mxu0 %v413
    %820 = vmatpush1.msra.mxu0 %v410
    %821 = vmatprep.subr.mxu0 0.0
    %822 = vmatpush2.msra.mxu0 0.0
    %823 = vmatprep.subr.mxu0 0.0
    %824 = vmatpush2.msra.mxu0 0.0
    %825 = vmatprep.subr.mxu0 0.0
    %826 = vmatpush2.msra.mxu0 0.0
    %827 = vmatprep.subr.mxu0 0.0
    %828 = vmatpush2.msra.mxu0 0.0
    %829 = vmatprep.subr.mxu0 0.0
    %830 = vmatpush2.msra.mxu0 0.0
    %831 = vmatprep.subr.mxu0 0.0
    %832 = vmatpush2.msra.mxu0 0.0
    %833 = vmatprep.subr.mxu0 0.0
    %834 = vmatpush2.msra.mxu0 0.0
    %835 = vmatprep.subr.mxu0 0.0
    %836 = vmatpush2.msra.mxu0 0.0
    %837 = vmatprep.subr.mxu0 0.0
    %838 = vmatpush2.msra.mxu0 0.0
    %839 = vmatprep.subr.mxu0 0.0
    %840 = vmatpush2.msra.mxu0 0.0
    %841 = vmatprep.subr.mxu0 0.0
    %842 = vmatpush2.msra.mxu0 0.0
    %843 = vmatprep.subr.mxu0 0.0
    %844 = vmatpush2.msra.mxu0 0.0
    %845 = vmatprep.subr.mxu0 0.0
    %846 = vmatpush2.msra.mxu0 0.0
    %847 = vmatprep.subr.mxu0 0.0
    %848 = vmatpush2.msra.mxu0 0.0
    %849 = vmatprep.subr.mxu0 0.0
    %850 = vmatpush2.msra.mxu0 0.0
    %851 = vmatprep.subr.mxu0 0.0
    %852 = vmatpush2.msra.mxu0 0.0
    %853 = vmatprep.mubr.f32.mxu0 0.0
    %854 = vmatmul.mubr.f32.gmra.mxu0 %v373
    %v855 = vpop.f32.mrf.mxu0
    %v856 = vadd.f32 %v354, %v855
    %v857 = vpop.f32.mrf.mxu0
    %v858 = vadd.f32 %v354, %v857
    %859 = vmatprep.mubr.f32.mxu0 0.0
    %860 = vmatmul.mubr.f32.gmra.mxu0 %v376
    %v861 = vpop.f32.mrf.mxu0
    %v862 = vadd.f32 %v359, %v861
    %v863 = vpop.f32.mrf.mxu0
    %v864 = vadd.f32 %v359, %v863
    %865 = vmatprep.mubr.f32.mxu0 0.0
    %866 = vmatmul.mubr.f32.gmra.mxu0 %v379
    %v867 = vpop.f32.mrf.mxu0
    %v868 = vadd.f32 %v364, %v867
    %v869 = vpop.f32.mrf.mxu0
    %v870 = vadd.f32 %v364, %v869
    %871 = vmatprep.mubr.f32.mxu0 0.0
    %872 = vmatmul.mubr.f32.gmra.mxu0 %v382
    %v873 = vpop.f32.mrf.mxu0
    %v874 = vadd.f32 %v369, %v873
    %v875 = vpop.f32.mrf.mxu0
    %v876 = vadd.f32 %v369, %v875
    %877 = vdwg.mxu0
    %878 = vmatprep.subr.mxu0 0.0
    %879 = vmatpush1.msra.mxu0 0.0
    %880 = vmatprep.subr.mxu0 0.0
    %881 = vmatpush1.msra.mxu0 0.0
    %882 = vmatprep.subr.mxu0 0.0
    %883 = vmatpush1.msra.mxu0 0.0
    %884 = vmatprep.subr.mxu0 0.0
    %885 = vmatpush1.msra.mxu0 0.0
    %886 = vmatprep.subr.mxu0 0.0
    %887 = vmatpush1.msra.mxu0 0.0
    %888 = vmatprep.subr.mxu0 0.0
    %889 = vmatpush1.msra.mxu0 0.0
    %890 = vmatprep.subr.mxu0 0.0
    %891 = vmatpush1.msra.mxu0 0.0
    %892 = vmatprep.subr.mxu0 0.0
    %893 = vmatpush1.msra.mxu0 0.0
    %894 = vmatprep.subr.mxu0 0.0
    %895 = vmatpush1.msra.mxu0 0.0
    %896 = vmatprep.subr.mxu0 0.0
    %897 = vmatpush1.msra.mxu0 0.0
    %898 = vmatprep.subr.mxu0 0.0
    %899 = vmatpush1.msra.mxu0 0.0
    %900 = vmatprep.subr.mxu0 0.0
    %901 = vmatpush1.msra.mxu0 0.0
    %902 = vmatprep.subr.mxu0 0.0
    %903 = vmatpush1.msra.mxu0 0.0
    %904 = vmatprep.subr.mxu0 0.0
    %905 = vmatpush1.msra.mxu0 0.0
    %906 = vmatprep.subr.mxu0 0.0
    %907 = vmatpush1.msra.mxu0 0.0
    %908 = vmatprep.subr.mxu0 %v419
    %909 = vmatpush1.msra.mxu0 %v416
    %910 = vmatprep.subr.mxu0 0.0
    %911 = vmatpush2.msra.mxu0 0.0
    %912 = vmatprep.subr.mxu0 0.0
    %913 = vmatpush2.msra.mxu0 0.0
    %914 = vmatprep.subr.mxu0 0.0
    %915 = vmatpush2.msra.mxu0 0.0
    %916 = vmatprep.subr.mxu0 0.0
    %917 = vmatpush2.msra.mxu0 0.0
    %918 = vmatprep.subr.mxu0 0.0
    %919 = vmatpush2.msra.mxu0 0.0
    %920 = vmatprep.subr.mxu0 0.0
    %921 = vmatpush2.msra.mxu0 0.0
    %922 = vmatprep.subr.mxu0 0.0
    %923 = vmatpush2.msra.mxu0 0.0
    %924 = vmatprep.subr.mxu0 0.0
    %925 = vmatpush2.msra.mxu0 0.0
    %926 = vmatprep.subr.mxu0 0.0
    %927 = vmatpush2.msra.mxu0 0.0
    %928 = vmatprep.subr.mxu0 0.0
    %929 = vmatpush2.msra.mxu0 0.0
    %930 = vmatprep.subr.mxu0 0.0
    %931 = vmatpush2.msra.mxu0 0.0
    %932 = vmatprep.subr.mxu0 0.0
    %933 = vmatpush2.msra.mxu0 0.0
    %934 = vmatprep.subr.mxu0 0.0
    %935 = vmatpush2.msra.mxu0 0.0
    %936 = vmatprep.subr.mxu0 0.0
    %937 = vmatpush2.msra.mxu0 0.0
    %938 = vmatprep.subr.mxu0 0.0
    %939 = vmatpush2.msra.mxu0 0.0
    %940 = vmatprep.subr.mxu0 0.0
    %941 = vmatpush2.msra.mxu0 0.0
    %942 = vmatprep.mubr.f32.mxu0 0.0
    %943 = vmatmul.mubr.f32.gmra.mxu0 %v373
    %v944 = vpop.f32.mrf.mxu0
    %v945 = vadd.f32 %v354, %v944
    %v946 = vpop.f32.mrf.mxu0
    %v947 = vadd.f32 %v354, %v946
    %948 = vmatprep.mubr.f32.mxu0 0.0
    %949 = vmatmul.mubr.f32.gmra.mxu0 %v376
    %v950 = vpop.f32.mrf.mxu0
    %v951 = vadd.f32 %v359, %v950
    %v952 = vpop.f32.mrf.mxu0
    %v953 = vadd.f32 %v359, %v952
    %954 = vmatprep.mubr.f32.mxu0 0.0
    %955 = vmatmul.mubr.f32.gmra.mxu0 %v379
    %v956 = vpop.f32.mrf.mxu0
    %v957 = vadd.f32 %v364, %v956
    %v958 = vpop.f32.mrf.mxu0
    %v959 = vadd.f32 %v364, %v958
    %960 = vmatprep.mubr.f32.mxu0 0.0
    %961 = vmatmul.mubr.f32.gmra.mxu0 %v382
    %v962 = vpop.f32.mrf.mxu0
    %v963 = vadd.f32 %v369, %v962
    %v964 = vpop.f32.mrf.mxu0
    %v965 = vadd.f32 %v369, %v964
    %966 = vdwg.mxu0
    %967 = vmatprep.subr.mxu0 0.0
    %968 = vmatpush1.msra.mxu0 0.0
    %969 = vmatprep.subr.mxu0 0.0
    %970 = vmatpush1.msra.mxu0 0.0
    %971 = vmatprep.subr.mxu0 0.0
    %972 = vmatpush1.msra.mxu0 0.0
    %973 = vmatprep.subr.mxu0 0.0
    %974 = vmatpush1.msra.mxu0 0.0
    %975 = vmatprep.subr.mxu0 0.0
    %976 = vmatpush1.msra.mxu0 0.0
    %977 = vmatprep.subr.mxu0 0.0
    %978 = vmatpush1.msra.mxu0 0.0
    %979 = vmatprep.subr.mxu0 0.0
    %980 = vmatpush1.msra.mxu0 0.0
    %981 = vmatprep.subr.mxu0 0.0
    %982 = vmatpush1.msra.mxu0 0.0
    %983 = vmatprep.subr.mxu0 0.0
    %984 = vmatpush1.msra.mxu0 0.0
    %985 = vmatprep.subr.mxu0 0.0
    %986 = vmatpush1.msra.mxu0 0.0
    %987 = vmatprep.subr.mxu0 0.0
    %988 = vmatpush1.msra.mxu0 0.0
    %989 = vmatprep.subr.mxu0 0.0
    %990 = vmatpush1.msra.mxu0 0.0
    %991 = vmatprep.subr.mxu0 0.0
    %992 = vmatpush1.msra.mxu0 0.0
    %993 = vmatprep.subr.mxu0 0.0
    %994 = vmatpush1.msra.mxu0 0.0
    %995 = vmatprep.subr.mxu0 0.0
    %996 = vmatpush1.msra.mxu0 0.0
    %997 = vmatprep.subr.mxu0 %v425
    %998 = vmatpush1.msra.mxu0 %v422
    %999 = vmatprep.subr.mxu0 0.0
    %1000 = vmatpush2.msra.mxu0 0.0
    %1001 = vmatprep.subr.mxu0 0.0
    %1002 = vmatpush2.msra.mxu0 0.0
    %1003 = vmatprep.subr.mxu0 0.0
    %1004 = vmatpush2.msra.mxu0 0.0
    %1005 = vmatprep.subr.mxu0 0.0
    %1006 = vmatpush2.msra.mxu0 0.0
    %1007 = vmatprep.subr.mxu0 0.0
    %1008 = vmatpush2.msra.mxu0 0.0
    %1009 = vmatprep.subr.mxu0 0.0
    %1010 = vmatpush2.msra.mxu0 0.0
    %1011 = vmatprep.subr.mxu0 0.0
    %1012 = vmatpush2.msra.mxu0 0.0
    %1013 = vmatprep.subr.mxu0 0.0
    %1014 = vmatpush2.msra.mxu0 0.0
    %1015 = vmatprep.subr.mxu0 0.0
    %1016 = vmatpush2.msra.mxu0 0.0
    %1017 = vmatprep.subr.mxu0 0.0
    %1018 = vmatpush2.msra.mxu0 0.0
    %1019 = vmatprep.subr.mxu0 0.0
    %1020 = vmatpush2.msra.mxu0 0.0
    %1021 = vmatprep.subr.mxu0 0.0
    %1022 = vmatpush2.msra.mxu0 0.0
    %1023 = vmatprep.subr.mxu0 0.0
    %1024 = vmatpush2.msra.mxu0 0.0
    %1025 = vmatprep.subr.mxu0 0.0
    %1026 = vmatpush2.msra.mxu0 0.0
    %1027 = vmatprep.subr.mxu0 0.0
    %1028 = vmatpush2.msra.mxu0 0.0
    %1029 = vmatprep.subr.mxu0 0.0
    %1030 = vmatpush2.msra.mxu0 0.0
    %1031 = vmatprep.mubr.f32.mxu0 0.0
    %1032 = vmatmul.mubr.f32.gmra.mxu0 %v373
    %v1033 = vpop.f32.mrf.mxu0
    %v1034 = vadd.f32 %v354, %v1033
    %v1035 = vpop.f32.mrf.mxu0
    %v1036 = vadd.f32 %v354, %v1035
    %1037 = vmatprep.mubr.f32.mxu0 0.0
    %1038 = vmatmul.mubr.f32.gmra.mxu0 %v376
    %v1039 = vpop.f32.mrf.mxu0
    %v1040 = vadd.f32 %v359, %v1039
    %v1041 = vpop.f32.mrf.mxu0
    %v1042 = vadd.f32 %v359, %v1041
    %1043 = vmatprep.mubr.f32.mxu0 0.0
    %1044 = vmatmul.mubr.f32.gmra.mxu0 %v379
    %v1045 = vpop.f32.mrf.mxu0
    %v1046 = vadd.f32 %v364, %v1045
    %v1047 = vpop.f32.mrf.mxu0
    %v1048 = vadd.f32 %v364, %v1047
    %1049 = vmatprep.mubr.f32.mxu0 0.0
    %1050 = vmatmul.mubr.f32.gmra.mxu0 %v382
    %v1051 = vpop.f32.mrf.mxu0
    %v1052 = vadd.f32 %v369, %v1051
    %v1053 = vpop.f32.mrf.mxu0
    %v1054 = vadd.f32 %v369, %v1053
    %1055 = vdwg.mxu0
    %1056 = vmatprep.subr.mxu0 0.0
    %1057 = vmatpush1.msra.mxu0 0.0
    %1058 = vmatprep.subr.mxu0 0.0
    %1059 = vmatpush1.msra.mxu0 0.0
    %1060 = vmatprep.subr.mxu0 0.0
    %1061 = vmatpush1.msra.mxu0 0.0
    %1062 = vmatprep.subr.mxu0 0.0
    %1063 = vmatpush1.msra.mxu0 0.0
    %1064 = vmatprep.subr.mxu0 0.0
    %1065 = vmatpush1.msra.mxu0 0.0
    %1066 = vmatprep.subr.mxu0 0.0
    %1067 = vmatpush1.msra.mxu0 0.0
    %1068 = vmatprep.subr.mxu0 0.0
    %1069 = vmatpush1.msra.mxu0 0.0
    %1070 = vmatprep.subr.mxu0 0.0
    %1071 = vmatpush1.msra.mxu0 0.0
    %1072 = vmatprep.subr.mxu0 0.0
    %1073 = vmatpush1.msra.mxu0 0.0
    %1074 = vmatprep.subr.mxu0 0.0
    %1075 = vmatpush1.msra.mxu0 0.0
    %1076 = vmatprep.subr.mxu0 0.0
    %1077 = vmatpush1.msra.mxu0 0.0
    %1078 = vmatprep.subr.mxu0 0.0
    %1079 = vmatpush1.msra.mxu0 0.0
    %1080 = vmatprep.subr.mxu0 0.0
    %1081 = vmatpush1.msra.mxu0 0.0
    %1082 = vmatprep.subr.mxu0 0.0
    %1083 = vmatpush1.msra.mxu0 0.0
    %1084 = vmatprep.subr.mxu0 0.0
    %1085 = vmatpush1.msra.mxu0 0.0
    %1086 = vmatprep.subr.mxu0 %v431
    %1087 = vmatpush1.msra.mxu0 %v428
    %1088 = vmatprep.subr.mxu0 0.0
    %1089 = vmatpush2.msra.mxu0 0.0
    %1090 = vmatprep.subr.mxu0 0.0
    %1091 = vmatpush2.msra.mxu0 0.0
    %1092 = vmatprep.subr.mxu0 0.0
    %1093 = vmatpush2.msra.mxu0 0.0
    %1094 = vmatprep.subr.mxu0 0.0
    %1095 = vmatpush2.msra.mxu0 0.0
    %1096 = vmatprep.subr.mxu0 0.0
    %1097 = vmatpush2.msra.mxu0 0.0
    %1098 = vmatprep.subr.mxu0 0.0
    %1099 = vmatpush2.msra.mxu0 0.0
    %1100 = vmatprep.subr.mxu0 0.0
    %1101 = vmatpush2.msra.mxu0 0.0
    %1102 = vmatprep.subr.mxu0 0.0
    %1103 = vmatpush2.msra.mxu0 0.0
    %1104 = vmatprep.subr.mxu0 0.0
    %1105 = vmatpush2.msra.mxu0 0.0
    %1106 = vmatprep.subr.mxu0 0.0
    %1107 = vmatpush2.msra.mxu0 0.0
    %1108 = vmatprep.subr.mxu0 0.0
    %1109 = vmatpush2.msra.mxu0 0.0
    %1110 = vmatprep.subr.mxu0 0.0
    %1111 = vmatpush2.msra.mxu0 0.0
    %1112 = vmatprep.subr.mxu0 0.0
    %1113 = vmatpush2.msra.mxu0 0.0
    %1114 = vmatprep.subr.mxu0 0.0
    %1115 = vmatpush2.msra.mxu0 0.0
    %1116 = vmatprep.subr.mxu0 0.0
    %1117 = vmatpush2.msra.mxu0 0.0
    %1118 = vmatprep.subr.mxu0 0.0
    %1119 = vmatpush2.msra.mxu0 0.0
    %1120 = vmatprep.mubr.f32.mxu0 0.0
    %1121 = vmatmul.mubr.f32.gmra.mxu0 %v373
    %v1122 = vpop.f32.mrf.mxu0
    %v1123 = vadd.f32 %v354, %v1122
    %v1124 = vpop.f32.mrf.mxu0
    %v1125 = vadd.f32 %v354, %v1124
    %1126 = vmatprep.mubr.f32.mxu0 0.0
    %1127 = vmatmul.mubr.f32.gmra.mxu0 %v376
    %v1128 = vpop.f32.mrf.mxu0
    %v1129 = vadd.f32 %v359, %v1128
    %v1130 = vpop.f32.mrf.mxu0
    %v1131 = vadd.f32 %v359, %v1130
    %1132 = vmatprep.mubr.f32.mxu0 0.0
    %1133 = vmatmul.mubr.f32.gmra.mxu0 %v379
    %v1134 = vpop.f32.mrf.mxu0
    %v1135 = vadd.f32 %v364, %v1134
    %v1136 = vpop.f32.mrf.mxu0
    %v1137 = vadd.f32 %v364, %v1136
    %1138 = vmatprep.mubr.f32.mxu0 0.0
    %1139 = vmatmul.mubr.f32.gmra.mxu0 %v382
    %v1140 = vpop.f32.mrf.mxu0
    %v1141 = vadd.f32 %v369, %v1140
    %v1142 = vpop.f32.mrf.mxu0
    %v1143 = vadd.f32 %v369, %v1142
    %1144 = vdwg.mxu0
    %v1145 = vmax.f32 %v500, 0.0
    %v1146 = vmax.f32 %v502, 0.0
    %v1147 = vmax.f32 %v589, 0.0
    %v1148 = vmax.f32 %v591, 0.0
    %v1149 = vmax.f32 %v678, 0.0
    %v1150 = vmax.f32 %v680, 0.0
    %v1151 = vmax.f32 %v767, 0.0
    %v1152 = vmax.f32 %v769, 0.0
    %v1153 = vmax.f32 %v856, 0.0
    %v1154 = vmax.f32 %v858, 0.0
    %v1155 = vmax.f32 %v945, 0.0
    %v1156 = vmax.f32 %v947, 0.0
    %v1157 = vmax.f32 %v1034, 0.0
    %v1158 = vmax.f32 %v1036, 0.0
    %v1159 = vmax.f32 %v1123, 0.0
    %v1160 = vmax.f32 %v1125, 0.0
    %v1161 = vmax.f32 %v506, 0.0
    %v1162 = vmax.f32 %v508, 0.0
    %v1163 = vmax.f32 %v595, 0.0
    %v1164 = vmax.f32 %v597, 0.0
    %v1165 = vmax.f32 %v684, 0.0
    %v1166 = vmax.f32 %v686, 0.0
    %v1167 = vmax.f32 %v773, 0.0
    %v1168 = vmax.f32 %v775, 0.0
    %v1169 = vmax.f32 %v862, 0.0
    %v1170 = vmax.f32 %v864, 0.0
    %v1171 = vmax.f32 %v951, 0.0
    %v1172 = vmax.f32 %v953, 0.0
    %v1173 = vmax.f32 %v1040, 0.0
    %v1174 = vmax.f32 %v1042, 0.0
    %v1175 = vmax.f32 %v1129, 0.0
    %v1176 = vmax.f32 %v1131, 0.0
    %v1177 = vmax.f32 %v512, 0.0
    %v1178 = vmax.f32 %v514, 0.0
    %v1179 = vmax.f32 %v601, 0.0
    %v1180 = vmax.f32 %v603, 0.0
    %v1181 = vmax.f32 %v690, 0.0
    %v1182 = vmax.f32 %v692, 0.0
    %v1183 = vmax.f32 %v779, 0.0
    %v1184 = vmax.f32 %v781, 0.0
    %v1185 = vmax.f32 %v868, 0.0
    %v1186 = vmax.f32 %v870, 0.0
    %v1187 = vmax.f32 %v957, 0.0
    %v1188 = vmax.f32 %v959, 0.0
    %v1189 = vmax.f32 %v1046, 0.0
    %v1190 = vmax.f32 %v1048, 0.0
    %v1191 = vmax.f32 %v1135, 0.0
    %v1192 = vmax.f32 %v1137, 0.0
    %v1193 = vmax.f32 %v518, 0.0
    %v1194 = vmax.f32 %v520, 0.0
    %v1195 = vmax.f32 %v607, 0.0
    %v1196 = vmax.f32 %v609, 0.0
    %v1197 = vmax.f32 %v696, 0.0
    %v1198 = vmax.f32 %v698, 0.0
    %v1199 = vmax.f32 %v785, 0.0
    %v1200 = vmax.f32 %v787, 0.0
    %v1201 = vmax.f32 %v874, 0.0
    %v1202 = vmax.f32 %v876, 0.0
    %v1203 = vmax.f32 %v963, 0.0
    %v1204 = vmax.f32 %v965, 0.0
    %v1205 = vmax.f32 %v1052, 0.0
    %v1206 = vmax.f32 %v1054, 0.0
    %v1207 = vmax.f32 %v1141, 0.0
    %v1208 = vmax.f32 %v1143, 0.0
    %v1209 = vld [vmem:[%s4] sm:$0xff]
    %v1210 = vld [vmem:[%s4 + $0x8] sm:$0xff]
    %v1211 = vld [vmem:[%s4 + $0x10] sm:$0xff]
    %v1212 = vld [vmem:[%s4 + $0x18] sm:$0xff]
    %v1213 = vld [vmem:[%s5] sm:$0xff]
    %v1214 = vld [vmem:[%s5 + $0x8] sm:$0xff]
    %v1215 = vld [vmem:[%s5 + $0x10] sm:$0xff]
    %v1216 = vld [vmem:[%s5 + $0x18] sm:$0xff]
    %1218 = vset.pattern.permute.xlu0 0
    %1219 = vperm.xlu0 %1218, %v1213
    %v1220 = vpop.permute.xlu0 %1219
    %1223 = vset.pattern.permute.xlu0 0
    %1224 = vperm.xlu0 %1223, %v1214
    %v1225 = vpop.permute.xlu0 %1224
    %1228 = vset.pattern.permute.xlu0 0
    %1229 = vperm.xlu0 %1228, %v1215
    %v1230 = vpop.permute.xlu0 %1229
    %1233 = vset.pattern.permute.xlu0 0
    %1234 = vperm.xlu0 %1233, %v1216
    %v1235 = vpop.permute.xlu0 %1234
    %vm1237 = vcmask 261120
    %v1239 = vsel %vm1237, %v1209, 0
    %v1242 = vsel %vm1237, %v1210, 0
    %v1245 = vsel %vm1237, %v1211, 0
    %v1248 = vsel %vm1237, %v1212, 0
    %1250 = vmatprep.subr.mxu0 0.0
    %1251 = vmatpush1.msra.mxu0 0.0
    %1252 = vmatprep.subr.mxu0 0.0
    %1253 = vmatpush1.msra.mxu0 0.0
    %1254 = vmatprep.subr.mxu0 0.0
    %1255 = vmatpush1.msra.mxu0 0.0
    %1256 = vmatprep.subr.mxu0 0.0
    %1257 = vmatpush1.msra.mxu0 0.0
    %1258 = vmatprep.subr.mxu0 0.0
    %1259 = vmatpush1.msra.mxu0 0.0
    %1260 = vmatprep.subr.mxu0 0.0
    %1261 = vmatpush1.msra.mxu0 0.0
    %1262 = vmatprep.subr.mxu0 0.0
    %1263 = vmatpush1.msra.mxu0 0.0
    %1264 = vmatprep.subr.mxu0 0.0
    %1265 = vmatpush1.msra.mxu0 0.0
    %1266 = vmatprep.subr.mxu0 0.0
    %1267 = vmatpush1.msra.mxu0 0.0
    %1268 = vmatprep.subr.mxu0 0.0
    %1269 = vmatpush1.msra.mxu0 0.0
    %1270 = vmatprep.subr.mxu0 0.0
    %1271 = vmatpush1.msra.mxu0 0.0
    %1272 = vmatprep.subr.mxu0 0.0
    %1273 = vmatpush1.msra.mxu0 0.0
    %1274 = vmatprep.subr.mxu0 %v1194
    %1275 = vmatpush1.msra.mxu0 %v1193
    %1276 = vmatprep.subr.mxu0 %v1178
    %1277 = vmatpush1.msra.mxu0 %v1177
    %1278 = vmatprep.subr.mxu0 %v1162
    %1279 = vmatpush1.msra.mxu0 %v1161
    %1280 = vmatprep.subr.mxu0 %v1146
    %1281 = vmatpush1.msra.mxu0 %v1145
    %1282 = vmatprep.subr.mxu0 0.0
    %1283 = vmatpush2.msra.mxu0 0.0
    %1284 = vmatprep.subr.mxu0 0.0
    %1285 = vmatpush2.msra.mxu0 0.0
    %1286 = vmatprep.subr.mxu0 0.0
    %1287 = vmatpush2.msra.mxu0 0.0
    %1288 = vmatprep.subr.mxu0 0.0
    %1289 = vmatpush2.msra.mxu0 0.0
    %1290 = vmatprep.subr.mxu0 0.0
    %1291 = vmatpush2.msra.mxu0 0.0
    %1292 = vmatprep.subr.mxu0 0.0
    %1293 = vmatpush2.msra.mxu0 0.0
    %1294 = vmatprep.subr.mxu0 0.0
    %1295 = vmatpush2.msra.mxu0 0.0
    %1296 = vmatprep.subr.mxu0 0.0
    %1297 = vmatpush2.msra.mxu0 0.0
    %1298 = vmatprep.subr.mxu0 0.0
    %1299 = vmatpush2.msra.mxu0 0.0
    %1300 = vmatprep.subr.mxu0 0.0
    %1301 = vmatpush2.msra.mxu0 0.0
    %1302 = vmatprep.subr.mxu0 0.0
    %1303 = vmatpush2.msra.mxu0 0.0
    %1304 = vmatprep.subr.mxu0 0.0
    %1305 = vmatpush2.msra.mxu0 0.0
    %1306 = vmatprep.subr.mxu0 0.0
    %1307 = vmatpush2.msra.mxu0 0.0
    %1308 = vmatprep.subr.mxu0 0.0
    %1309 = vmatpush2.msra.mxu0 0.0
    %1310 = vmatprep.subr.mxu0 0.0
    %1311 = vmatpush2.msra.mxu0 0.0
    %1312 = vmatprep.subr.mxu0 0.0
    %1313 = vmatpush2.msra.mxu0 0.0
    %1314 = vmatprep.mubr.f32.mxu0 0.0
    %1315 = vmatmul.mubr.f32.gmra.mxu0 %v1239
    %v1316 = vpop.f32.mrf.mxu0
    %v1317 = vadd.f32 %v1220, %v1316
    %v1318 = vpop.f32.mrf.mxu0
    %v1319 = vadd.f32 %v1220, %v1318
    %1320 = vmatprep.mubr.f32.mxu0 0.0
    %1321 = vmatmul.mubr.f32.gmra.mxu0 %v1242
    %v1322 = vpop.f32.mrf.mxu0
    %v1323 = vadd.f32 %v1225, %v1322
    %v1324 = vpop.f32.mrf.mxu0
    %v1325 = vadd.f32 %v1225, %v1324
    %1326 = vmatprep.mubr.f32.mxu0 0.0
    %1327 = vmatmul.mubr.f32.gmra.mxu0 %v1245
    %v1328 = vpop.f32.mrf.mxu0
    %v1329 = vadd.f32 %v1230, %v1328
    %v1330 = vpop.f32.mrf.mxu0
    %v1331 = vadd.f32 %v1230, %v1330
    %1332 = vmatprep.mubr.f32.mxu0 0.0
    %1333 = vmatmul.mubr.f32.gmra.mxu0 %v1248
    %v1334 = vpop.f32.mrf.mxu0
    %v1335 = vadd.f32 %v1235, %v1334
    %v1336 = vpop.f32.mrf.mxu0
    %v1337 = vadd.f32 %v1235, %v1336
    %1338 = vdwg.mxu0
    %1339 = vmatprep.subr.mxu0 0.0
    %1340 = vmatpush1.msra.mxu0 0.0
    %1341 = vmatprep.subr.mxu0 0.0
    %1342 = vmatpush1.msra.mxu0 0.0
    %1343 = vmatprep.subr.mxu0 0.0
    %1344 = vmatpush1.msra.mxu0 0.0
    %1345 = vmatprep.subr.mxu0 0.0
    %1346 = vmatpush1.msra.mxu0 0.0
    %1347 = vmatprep.subr.mxu0 0.0
    %1348 = vmatpush1.msra.mxu0 0.0
    %1349 = vmatprep.subr.mxu0 0.0
    %1350 = vmatpush1.msra.mxu0 0.0
    %1351 = vmatprep.subr.mxu0 0.0
    %1352 = vmatpush1.msra.mxu0 0.0
    %1353 = vmatprep.subr.mxu0 0.0
    %1354 = vmatpush1.msra.mxu0 0.0
    %1355 = vmatprep.subr.mxu0 0.0
    %1356 = vmatpush1.msra.mxu0 0.0
    %1357 = vmatprep.subr.mxu0 0.0
    %1358 = vmatpush1.msra.mxu0 0.0
    %1359 = vmatprep.subr.mxu0 0.0
    %1360 = vmatpush1.msra.mxu0 0.0
    %1361 = vmatprep.subr.mxu0 0.0
    %1362 = vmatpush1.msra.mxu0 0.0
    %1363 = vmatprep.subr.mxu0 %v1196
    %1364 = vmatpush1.msra.mxu0 %v1195
    %1365 = vmatprep.subr.mxu0 %v1180
    %1366 = vmatpush1.msra.mxu0 %v1179
    %1367 = vmatprep.subr.mxu0 %v1164
    %1368 = vmatpush1.msra.mxu0 %v1163
    %1369 = vmatprep.subr.mxu0 %v1148
    %1370 = vmatpush1.msra.mxu0 %v1147
    %1371 = vmatprep.subr.mxu0 0.0
    %1372 = vmatpush2.msra.mxu0 0.0
    %1373 = vmatprep.subr.mxu0 0.0
    %1374 = vmatpush2.msra.mxu0 0.0
    %1375 = vmatprep.subr.mxu0 0.0
    %1376 = vmatpush2.msra.mxu0 0.0
    %1377 = vmatprep.subr.mxu0 0.0
    %1378 = vmatpush2.msra.mxu0 0.0
    %1379 = vmatprep.subr.mxu0 0.0
    %1380 = vmatpush2.msra.mxu0 0.0
    %1381 = vmatprep.subr.mxu0 0.0
    %1382 = vmatpush2.msra.mxu0 0.0
    %1383 = vmatprep.subr.mxu0 0.0
    %1384 = vmatpush2.msra.mxu0 0.0
    %1385 = vmatprep.subr.mxu0 0.0
    %1386 = vmatpush2.msra.mxu0 0.0
    %1387 = vmatprep.subr.mxu0 0.0
    %1388 = vmatpush2.msra.mxu0 0.0
    %1389 = vmatprep.subr.mxu0 0.0
    %1390 = vmatpush2.msra.mxu0 0.0
    %1391 = vmatprep.subr.mxu0 0.0
    %1392 = vmatpush2.msra.mxu0 0.0
    %1393 = vmatprep.subr.mxu0 0.0
    %1394 = vmatpush2.msra.mxu0 0.0
    %1395 = vmatprep.subr.mxu0 0.0
    %1396 = vmatpush2.msra.mxu0 0.0
    %1397 = vmatprep.subr.mxu0 0.0
    %1398 = vmatpush2.msra.mxu0 0.0
    %1399 = vmatprep.subr.mxu0 0.0
    %1400 = vmatpush2.msra.mxu0 0.0
    %1401 = vmatprep.subr.mxu0 0.0
    %1402 = vmatpush2.msra.mxu0 0.0
    %1403 = vmatprep.mubr.f32.mxu0 0.0
    %1404 = vmatmul.mubr.f32.gmra.mxu0 %v1239
    %v1405 = vpop.f32.mrf.mxu0
    %v1406 = vadd.f32 %v1220, %v1405
    %v1407 = vpop.f32.mrf.mxu0
    %v1408 = vadd.f32 %v1220, %v1407
    %1409 = vmatprep.mubr.f32.mxu0 0.0
    %1410 = vmatmul.mubr.f32.gmra.mxu0 %v1242
    %v1411 = vpop.f32.mrf.mxu0
    %v1412 = vadd.f32 %v1225, %v1411
    %v1413 = vpop.f32.mrf.mxu0
    %v1414 = vadd.f32 %v1225, %v1413
    %1415 = vmatprep.mubr.f32.mxu0 0.0
    %1416 = vmatmul.mubr.f32.gmra.mxu0 %v1245
    %v1417 = vpop.f32.mrf.mxu0
    %v1418 = vadd.f32 %v1230, %v1417
    %v1419 = vpop.f32.mrf.mxu0
    %v1420 = vadd.f32 %v1230, %v1419
    %1421 = vmatprep.mubr.f32.mxu0 0.0
    %1422 = vmatmul.mubr.f32.gmra.mxu0 %v1248
    %v1423 = vpop.f32.mrf.mxu0
    %v1424 = vadd.f32 %v1235, %v1423
    %v1425 = vpop.f32.mrf.mxu0
    %v1426 = vadd.f32 %v1235, %v1425
    %1427 = vdwg.mxu0
    %1428 = vmatprep.subr.mxu0 0.0
    %1429 = vmatpush1.msra.mxu0 0.0
    %1430 = vmatprep.subr.mxu0 0.0
    %1431 = vmatpush1.msra.mxu0 0.0
    %1432 = vmatprep.subr.mxu0 0.0
    %1433 = vmatpush1.msra.mxu0 0.0
    %1434 = vmatprep.subr.mxu0 0.0
    %1435 = vmatpush1.msra.mxu0 0.0
    %1436 = vmatprep.subr.mxu0 0.0
    %1437 = vmatpush1.msra.mxu0 0.0
    %1438 = vmatprep.subr.mxu0 0.0
    %1439 = vmatpush1.msra.mxu0 0.0
    %1440 = vmatprep.subr.mxu0 0.0
    %1441 = vmatpush1.msra.mxu0 0.0
    %1442 = vmatprep.subr.mxu0 0.0
    %1443 = vmatpush1.msra.mxu0 0.0
    %1444 = vmatprep.subr.mxu0 0.0
    %1445 = vmatpush1.msra.mxu0 0.0
    %1446 = vmatprep.subr.mxu0 0.0
    %1447 = vmatpush1.msra.mxu0 0.0
    %1448 = vmatprep.subr.mxu0 0.0
    %1449 = vmatpush1.msra.mxu0 0.0
    %1450 = vmatprep.subr.mxu0 0.0
    %1451 = vmatpush1.msra.mxu0 0.0
    %1452 = vmatprep.subr.mxu0 %v1198
    %1453 = vmatpush1.msra.mxu0 %v1197
    %1454 = vmatprep.subr.mxu0 %v1182
    %1455 = vmatpush1.msra.mxu0 %v1181
    %1456 = vmatprep.subr.mxu0 %v1166
    %1457 = vmatpush1.msra.mxu0 %v1165
    %1458 = vmatprep.subr.mxu0 %v1150
    %1459 = vmatpush1.msra.mxu0 %v1149
    %1460 = vmatprep.subr.mxu0 0.0
    %1461 = vmatpush2.msra.mxu0 0.0
    %1462 = vmatprep.subr.mxu0 0.0
    %1463 = vmatpush2.msra.mxu0 0.0
    %1464 = vmatprep.subr.mxu0 0.0
    %1465 = vmatpush2.msra.mxu0 0.0
    %1466 = vmatprep.subr.mxu0 0.0
    %1467 = vmatpush2.msra.mxu0 0.0
    %1468 = vmatprep.subr.mxu0 0.0
    %1469 = vmatpush2.msra.mxu0 0.0
    %1470 = vmatprep.subr.mxu0 0.0
    %1471 = vmatpush2.msra.mxu0 0.0
    %1472 = vmatprep.subr.mxu0 0.0
    %1473 = vmatpush2.msra.mxu0 0.0
    %1474 = vmatprep.subr.mxu0 0.0
    %1475 = vmatpush2.msra.mxu0 0.0
    %1476 = vmatprep.subr.mxu0 0.0
    %1477 = vmatpush2.msra.mxu0 0.0
    %1478 = vmatprep.subr.mxu0 0.0
    %1479 = vmatpush2.msra.mxu0 0.0
    %1480 = vmatprep.subr.mxu0 0.0
    %1481 = vmatpush2.msra.mxu0 0.0
    %1482 = vmatprep.subr.mxu0 0.0
    %1483 = vmatpush2.msra.mxu0 0.0
    %1484 = vmatprep.subr.mxu0 0.0
    %1485 = vmatpush2.msra.mxu0 0.0
    %1486 = vmatprep.subr.mxu0 0.0
    %1487 = vmatpush2.msra.mxu0 0.0
    %1488 = vmatprep.subr.mxu0 0.0
    %1489 = vmatpush2.msra.mxu0 0.0
    %1490 = vmatprep.subr.mxu0 0.0
    %1491 = vmatpush2.msra.mxu0 0.0
    %1492 = vmatprep.mubr.f32.mxu0 0.0
    %1493 = vmatmul.mubr.f32.gmra.mxu0 %v1239
    %v1494 = vpop.f32.mrf.mxu0
    %v1495 = vadd.f32 %v1220, %v1494
    %v1496 = vpop.f32.mrf.mxu0
    %v1497 = vadd.f32 %v1220, %v1496
    %1498 = vmatprep.mubr.f32.mxu0 0.0
    %1499 = vmatmul.mubr.f32.gmra.mxu0 %v1242
    %v1500 = vpop.f32.mrf.mxu0
    %v1501 = vadd.f32 %v1225, %v1500
    %v1502 = vpop.f32.mrf.mxu0
    %v1503 = vadd.f32 %v1225, %v1502
    %1504 = vmatprep.mubr.f32.mxu0 0.0
    %1505 = vmatmul.mubr.f32.gmra.mxu0 %v1245
    %v1506 = vpop.f32.mrf.mxu0
    %v1507 = vadd.f32 %v1230, %v1506
    %v1508 = vpop.f32.mrf.mxu0
    %v1509 = vadd.f32 %v1230, %v1508
    %1510 = vmatprep.mubr.f32.mxu0 0.0
    %1511 = vmatmul.mubr.f32.gmra.mxu0 %v1248
    %v1512 = vpop.f32.mrf.mxu0
    %v1513 = vadd.f32 %v1235, %v1512
    %v1514 = vpop.f32.mrf.mxu0
    %v1515 = vadd.f32 %v1235, %v1514
    %1516 = vdwg.mxu0
    %1517 = vmatprep.subr.mxu0 0.0
    %1518 = vmatpush1.msra.mxu0 0.0
    %1519 = vmatprep.subr.mxu0 0.0
    %1520 = vmatpush1.msra.mxu0 0.0
    %1521 = vmatprep.subr.mxu0 0.0
    %1522 = vmatpush1.msra.mxu0 0.0
    %1523 = vmatprep.subr.mxu0 0.0
    %1524 = vmatpush1.msra.mxu0 0.0
    %1525 = vmatprep.subr.mxu0 0.0
    %1526 = vmatpush1.msra.mxu0 0.0
    %1527 = vmatprep.subr.mxu0 0.0
    %1528 = vmatpush1.msra.mxu0 0.0
    %1529 = vmatprep.subr.mxu0 0.0
    %1530 = vmatpush1.msra.mxu0 0.0
    %1531 = vmatprep.subr.mxu0 0.0
    %1532 = vmatpush1.msra.mxu0 0.0
    %1533 = vmatprep.subr.mxu0 0.0
    %1534 = vmatpush1.msra.mxu0 0.0
    %1535 = vmatprep.subr.mxu0 0.0
    %1536 = vmatpush1.msra.mxu0 0.0
    %1537 = vmatprep.subr.mxu0 0.0
    %1538 = vmatpush1.msra.mxu0 0.0
    %1539 = vmatprep.subr.mxu0 0.0
    %1540 = vmatpush1.msra.mxu0 0.0
    %1541 = vmatprep.subr.mxu0 %v1200
    %1542 = vmatpush1.msra.mxu0 %v1199
    %1543 = vmatprep.subr.mxu0 %v1184
    %1544 = vmatpush1.msra.mxu0 %v1183
    %1545 = vmatprep.subr.mxu0 %v1168
    %1546 = vmatpush1.msra.mxu0 %v1167
    %1547 = vmatprep.subr.mxu0 %v1152
    %1548 = vmatpush1.msra.mxu0 %v1151
    %1549 = vmatprep.subr.mxu0 0.0
    %1550 = vmatpush2.msra.mxu0 0.0
    %1551 = vmatprep.subr.mxu0 0.0
    %1552 = vmatpush2.msra.mxu0 0.0
    %1553 = vmatprep.subr.mxu0 0.0
    %1554 = vmatpush2.msra.mxu0 0.0
    %1555 = vmatprep.subr.mxu0 0.0
    %1556 = vmatpush2.msra.mxu0 0.0
    %1557 = vmatprep.subr.mxu0 0.0
    %1558 = vmatpush2.msra.mxu0 0.0
    %1559 = vmatprep.subr.mxu0 0.0
    %1560 = vmatpush2.msra.mxu0 0.0
    %1561 = vmatprep.subr.mxu0 0.0
    %1562 = vmatpush2.msra.mxu0 0.0
    %1563 = vmatprep.subr.mxu0 0.0
    %1564 = vmatpush2.msra.mxu0 0.0
    %1565 = vmatprep.subr.mxu0 0.0
    %1566 = vmatpush2.msra.mxu0 0.0
    %1567 = vmatprep.subr.mxu0 0.0
    %1568 = vmatpush2.msra.mxu0 0.0
    %1569 = vmatprep.subr.mxu0 0.0
    %1570 = vmatpush2.msra.mxu0 0.0
    %1571 = vmatprep.subr.mxu0 0.0
    %1572 = vmatpush2.msra.mxu0 0.0
    %1573 = vmatprep.subr.mxu0 0.0
    %1574 = vmatpush2.msra.mxu0 0.0
    %1575 = vmatprep.subr.mxu0 0.0
    %1576 = vmatpush2.msra.mxu0 0.0
    %1577 = vmatprep.subr.mxu0 0.0
    %1578 = vmatpush2.msra.mxu0 0.0
    %1579 = vmatprep.subr.mxu0 0.0
    %1580 = vmatpush2.msra.mxu0 0.0
    %1581 = vmatprep.mubr.f32.mxu0 0.0
    %1582 = vmatmul.mubr.f32.gmra.mxu0 %v1239
    %v1583 = vpop.f32.mrf.mxu0
    %v1584 = vadd.f32 %v1220, %v1583
    %v1585 = vpop.f32.mrf.mxu0
    %v1586 = vadd.f32 %v1220, %v1585
    %1587 = vmatprep.mubr.f32.mxu0 0.0
    %1588 = vmatmul.mubr.f32.gmra.mxu0 %v1242
    %v1589 = vpop.f32.mrf.mxu0
    %v1590 = vadd.f32 %v1225, %v1589
    %v1591 = vpop.f32.mrf.mxu0
    %v1592 = vadd.f32 %v1225, %v1591
    %1593 = vmatprep.mubr.f32.mxu0 0.0
    %1594 = vmatmul.mubr.f32.gmra.mxu0 %v1245
    %v1595 = vpop.f32.mrf.mxu0
    %v1596 = vadd.f32 %v1230, %v1595
    %v1597 = vpop.f32.mrf.mxu0
    %v1598 = vadd.f32 %v1230, %v1597
    %1599 = vmatprep.mubr.f32.mxu0 0.0
    %1600 = vmatmul.mubr.f32.gmra.mxu0 %v1248
    %v1601 = vpop.f32.mrf.mxu0
    %v1602 = vadd.f32 %v1235, %v1601
    %v1603 = vpop.f32.mrf.mxu0
    %v1604 = vadd.f32 %v1235, %v1603
    %1605 = vdwg.mxu0
    %1606 = vmatprep.subr.mxu0 0.0
    %1607 = vmatpush1.msra.mxu0 0.0
    %1608 = vmatprep.subr.mxu0 0.0
    %1609 = vmatpush1.msra.mxu0 0.0
    %1610 = vmatprep.subr.mxu0 0.0
    %1611 = vmatpush1.msra.mxu0 0.0
    %1612 = vmatprep.subr.mxu0 0.0
    %1613 = vmatpush1.msra.mxu0 0.0
    %1614 = vmatprep.subr.mxu0 0.0
    %1615 = vmatpush1.msra.mxu0 0.0
    %1616 = vmatprep.subr.mxu0 0.0
    %1617 = vmatpush1.msra.mxu0 0.0
    %1618 = vmatprep.subr.mxu0 0.0
    %1619 = vmatpush1.msra.mxu0 0.0
    %1620 = vmatprep.subr.mxu0 0.0
    %1621 = vmatpush1.msra.mxu0 0.0
    %1622 = vmatprep.subr.mxu0 0.0
    %1623 = vmatpush1.msra.mxu0 0.0
    %1624 = vmatprep.subr.mxu0 0.0
    %1625 = vmatpush1.msra.mxu0 0.0
    %1626 = vmatprep.subr.mxu0 0.0
    %1627 = vmatpush1.msra.mxu0 0.0
    %1628 = vmatprep.subr.mxu0 0.0
    %1629 = vmatpush1.msra.mxu0 0.0
    %1630 = vmatprep.subr.mxu0 %v1202
    %1631 = vmatpush1.msra.mxu0 %v1201
    %1632 = vmatprep.subr.mxu0 %v1186
    %1633 = vmatpush1.msra.mxu0 %v1185
    %1634 = vmatprep.subr.mxu0 %v1170
    %1635 = vmatpush1.msra.mxu0 %v1169
    %1636 = vmatprep.subr.mxu0 %v1154
    %1637 = vmatpush1.msra.mxu0 %v1153
    %1638 = vmatprep.subr.mxu0 0.0
    %1639 = vmatpush2.msra.mxu0 0.0
    %1640 = vmatprep.subr.mxu0 0.0
    %1641 = vmatpush2.msra.mxu0 0.0
    %1642 = vmatprep.subr.mxu0 0.0
    %1643 = vmatpush2.msra.mxu0 0.0
    %1644 = vmatprep.subr.mxu0 0.0
    %1645 = vmatpush2.msra.mxu0 0.0
    %1646 = vmatprep.subr.mxu0 0.0
    %1647 = vmatpush2.msra.mxu0 0.0
    %1648 = vmatprep.subr.mxu0 0.0
    %1649 = vmatpush2.msra.mxu0 0.0
    %1650 = vmatprep.subr.mxu0 0.0
    %1651 = vmatpush2.msra.mxu0 0.0
    %1652 = vmatprep.subr.mxu0 0.0
    %1653 = vmatpush2.msra.mxu0 0.0
    %1654 = vmatprep.subr.mxu0 0.0
    %1655 = vmatpush2.msra.mxu0 0.0
    %1656 = vmatprep.subr.mxu0 0.0
    %1657 = vmatpush2.msra.mxu0 0.0
    %1658 = vmatprep.subr.mxu0 0.0
    %1659 = vmatpush2.msra.mxu0 0.0
    %1660 = vmatprep.subr.mxu0 0.0
    %1661 = vmatpush2.msra.mxu0 0.0
    %1662 = vmatprep.subr.mxu0 0.0
    %1663 = vmatpush2.msra.mxu0 0.0
    %1664 = vmatprep.subr.mxu0 0.0
    %1665 = vmatpush2.msra.mxu0 0.0
    %1666 = vmatprep.subr.mxu0 0.0
    %1667 = vmatpush2.msra.mxu0 0.0
    %1668 = vmatprep.subr.mxu0 0.0
    %1669 = vmatpush2.msra.mxu0 0.0
    %1670 = vmatprep.mubr.f32.mxu0 0.0
    %1671 = vmatmul.mubr.f32.gmra.mxu0 %v1239
    %v1672 = vpop.f32.mrf.mxu0
    %v1673 = vadd.f32 %v1220, %v1672
    %v1674 = vpop.f32.mrf.mxu0
    %v1675 = vadd.f32 %v1220, %v1674
    %1676 = vmatprep.mubr.f32.mxu0 0.0
    %1677 = vmatmul.mubr.f32.gmra.mxu0 %v1242
    %v1678 = vpop.f32.mrf.mxu0
    %v1679 = vadd.f32 %v1225, %v1678
    %v1680 = vpop.f32.mrf.mxu0
    %v1681 = vadd.f32 %v1225, %v1680
    %1682 = vmatprep.mubr.f32.mxu0 0.0
    %1683 = vmatmul.mubr.f32.gmra.mxu0 %v1245
    %v1684 = vpop.f32.mrf.mxu0
    %v1685 = vadd.f32 %v1230, %v1684
    %v1686 = vpop.f32.mrf.mxu0
    %v1687 = vadd.f32 %v1230, %v1686
    %1688 = vmatprep.mubr.f32.mxu0 0.0
    %1689 = vmatmul.mubr.f32.gmra.mxu0 %v1248
    %v1690 = vpop.f32.mrf.mxu0
    %v1691 = vadd.f32 %v1235, %v1690
    %v1692 = vpop.f32.mrf.mxu0
    %v1693 = vadd.f32 %v1235, %v1692
    %1694 = vdwg.mxu0
    %1695 = vmatprep.subr.mxu0 0.0
    %1696 = vmatpush1.msra.mxu0 0.0
    %1697 = vmatprep.subr.mxu0 0.0
    %1698 = vmatpush1.msra.mxu0 0.0
    %1699 = vmatprep.subr.mxu0 0.0
    %1700 = vmatpush1.msra.mxu0 0.0
    %1701 = vmatprep.subr.mxu0 0.0
    %1702 = vmatpush1.msra.mxu0 0.0
    %1703 = vmatprep.subr.mxu0 0.0
    %1704 = vmatpush1.msra.mxu0 0.0
    %1705 = vmatprep.subr.mxu0 0.0
    %1706 = vmatpush1.msra.mxu0 0.0
    %1707 = vmatprep.subr.mxu0 0.0
    %1708 = vmatpush1.msra.mxu0 0.0
    %1709 = vmatprep.subr.mxu0 0.0
    %1710 = vmatpush1.msra.mxu0 0.0
    %1711 = vmatprep.subr.mxu0 0.0
    %1712 = vmatpush1.msra.mxu0 0.0
    %1713 = vmatprep.subr.mxu0 0.0
    %1714 = vmatpush1.msra.mxu0 0.0
    %1715 = vmatprep.subr.mxu0 0.0
    %1716 = vmatpush1.msra.mxu0 0.0
    %1717 = vmatprep.subr.mxu0 0.0
    %1718 = vmatpush1.msra.mxu0 0.0
    %1719 = vmatprep.subr.mxu0 %v1204
    %1720 = vmatpush1.msra.mxu0 %v1203
    %1721 = vmatprep.subr.mxu0 %v1188
    %1722 = vmatpush1.msra.mxu0 %v1187
    %1723 = vmatprep.subr.mxu0 %v1172
    %1724 = vmatpush1.msra.mxu0 %v1171
    %1725 = vmatprep.subr.mxu0 %v1156
    %1726 = vmatpush1.msra.mxu0 %v1155
    %1727 = vmatprep.subr.mxu0 0.0
    %1728 = vmatpush2.msra.mxu0 0.0
    %1729 = vmatprep.subr.mxu0 0.0
    %1730 = vmatpush2.msra.mxu0 0.0
    %1731 = vmatprep.subr.mxu0 0.0
    %1732 = vmatpush2.msra.mxu0 0.0
    %1733 = vmatprep.subr.mxu0 0.0
    %1734 = vmatpush2.msra.mxu0 0.0
    %1735 = vmatprep.subr.mxu0 0.0
    %1736 = vmatpush2.msra.mxu0 0.0
    %1737 = vmatprep.subr.mxu0 0.0
    %1738 = vmatpush2.msra.mxu0 0.0
    %1739 = vmatprep.subr.mxu0 0.0
    %1740 = vmatpush2.msra.mxu0 0.0
    %1741 = vmatprep.subr.mxu0 0.0
    %1742 = vmatpush2.msra.mxu0 0.0
    %1743 = vmatprep.subr.mxu0 0.0
    %1744 = vmatpush2.msra.mxu0 0.0
    %1745 = vmatprep.subr.mxu0 0.0
    %1746 = vmatpush2.msra.mxu0 0.0
    %1747 = vmatprep.subr.mxu0 0.0
    %1748 = vmatpush2.msra.mxu0 0.0
    %1749 = vmatprep.subr.mxu0 0.0
    %1750 = vmatpush2.msra.mxu0 0.0
    %1751 = vmatprep.subr.mxu0 0.0
    %1752 = vmatpush2.msra.mxu0 0.0
    %1753 = vmatprep.subr.mxu0 0.0
    %1754 = vmatpush2.msra.mxu0 0.0
    %1755 = vmatprep.subr.mxu0 0.0
    %1756 = vmatpush2.msra.mxu0 0.0
    %1757 = vmatprep.subr.mxu0 0.0
    %1758 = vmatpush2.msra.mxu0 0.0
    %1759 = vmatprep.mubr.f32.mxu0 0.0
    %1760 = vmatmul.mubr.f32.gmra.mxu0 %v1239
    %v1761 = vpop.f32.mrf.mxu0
    %v1762 = vadd.f32 %v1220, %v1761
    %v1763 = vpop.f32.mrf.mxu0
    %v1764 = vadd.f32 %v1220, %v1763
    %1765 = vmatprep.mubr.f32.mxu0 0.0
    %1766 = vmatmul.mubr.f32.gmra.mxu0 %v1242
    %v1767 = vpop.f32.mrf.mxu0
    %v1768 = vadd.f32 %v1225, %v1767
    %v1769 = vpop.f32.mrf.mxu0
    %v1770 = vadd.f32 %v1225, %v1769
    %1771 = vmatprep.mubr.f32.mxu0 0.0
    %1772 = vmatmul.mubr.f32.gmra.mxu0 %v1245
    %v1773 = vpop.f32.mrf.mxu0
    %v1774 = vadd.f32 %v1230, %v1773
    %v1775 = vpop.f32.mrf.mxu0
    %v1776 = vadd.f32 %v1230, %v1775
    %1777 = vmatprep.mubr.f32.mxu0 0.0
    %1778 = vmatmul.mubr.f32.gmra.mxu0 %v1248
    %v1779 = vpop.f32.mrf.mxu0
    %v1780 = vadd.f32 %v1235, %v1779
    %v1781 = vpop.f32.mrf.mxu0
    %v1782 = vadd.f32 %v1235, %v1781
    %1783 = vdwg.mxu0
    %1784 = vmatprep.subr.mxu0 0.0
    %1785 = vmatpush1.msra.mxu0 0.0
    %1786 = vmatprep.subr.mxu0 0.0
    %1787 = vmatpush1.msra.mxu0 0.0
    %1788 = vmatprep.subr.mxu0 0.0
    %1789 = vmatpush1.msra.mxu0 0.0
    %1790 = vmatprep.subr.mxu0 0.0
    %1791 = vmatpush1.msra.mxu0 0.0
    %1792 = vmatprep.subr.mxu0 0.0
    %1793 = vmatpush1.msra.mxu0 0.0
    %1794 = vmatprep.subr.mxu0 0.0
    %1795 = vmatpush1.msra.mxu0 0.0
    %1796 = vmatprep.subr.mxu0 0.0
    %1797 = vmatpush1.msra.mxu0 0.0
    %1798 = vmatprep.subr.mxu0 0.0
    %1799 = vmatpush1.msra.mxu0 0.0
    %1800 = vmatprep.subr.mxu0 0.0
    %1801 = vmatpush1.msra.mxu0 0.0
    %1802 = vmatprep.subr.mxu0 0.0
    %1803 = vmatpush1.msra.mxu0 0.0
    %1804 = vmatprep.subr.mxu0 0.0
    %1805 = vmatpush1.msra.mxu0 0.0
    %1806 = vmatprep.subr.mxu0 0.0
    %1807 = vmatpush1.msra.mxu0 0.0
    %1808 = vmatprep.subr.mxu0 %v1206
    %1809 = vmatpush1.msra.mxu0 %v1205
    %1810 = vmatprep.subr.mxu0 %v1190
    %1811 = vmatpush1.msra.mxu0 %v1189
    %1812 = vmatprep.subr.mxu0 %v1174
    %1813 = vmatpush1.msra.mxu0 %v1173
    %1814 = vmatprep.subr.mxu0 %v1158
    %1815 = vmatpush1.msra.mxu0 %v1157
    %1816 = vmatprep.subr.mxu0 0.0
    %1817 = vmatpush2.msra.mxu0 0.0
    %1818 = vmatprep.subr.mxu0 0.0
    %1819 = vmatpush2.msra.mxu0 0.0
    %1820 = vmatprep.subr.mxu0 0.0
    %1821 = vmatpush2.msra.mxu0 0.0
    %1822 = vmatprep.subr.mxu0 0.0
    %1823 = vmatpush2.msra.mxu0 0.0
    %1824 = vmatprep.subr.mxu0 0.0
    %1825 = vmatpush2.msra.mxu0 0.0
    %1826 = vmatprep.subr.mxu0 0.0
    %1827 = vmatpush2.msra.mxu0 0.0
    %1828 = vmatprep.subr.mxu0 0.0
    %1829 = vmatpush2.msra.mxu0 0.0
    %1830 = vmatprep.subr.mxu0 0.0
    %1831 = vmatpush2.msra.mxu0 0.0
    %1832 = vmatprep.subr.mxu0 0.0
    %1833 = vmatpush2.msra.mxu0 0.0
    %1834 = vmatprep.subr.mxu0 0.0
    %1835 = vmatpush2.msra.mxu0 0.0
    %1836 = vmatprep.subr.mxu0 0.0
    %1837 = vmatpush2.msra.mxu0 0.0
    %1838 = vmatprep.subr.mxu0 0.0
    %1839 = vmatpush2.msra.mxu0 0.0
    %1840 = vmatprep.subr.mxu0 0.0
    %1841 = vmatpush2.msra.mxu0 0.0
    %1842 = vmatprep.subr.mxu0 0.0
    %1843 = vmatpush2.msra.mxu0 0.0
    %1844 = vmatprep.subr.mxu0 0.0
    %1845 = vmatpush2.msra.mxu0 0.0
    %1846 = vmatprep.subr.mxu0 0.0
    %1847 = vmatpush2.msra.mxu0 0.0
    %1848 = vmatprep.mubr.f32.mxu0 0.0
    %1849 = vmatmul.mubr.f32.gmra.mxu0 %v1239
    %v1850 = vpop.f32.mrf.mxu0
    %v1851 = vadd.f32 %v1220, %v1850
    %v1852 = vpop.f32.mrf.mxu0
    %v1853 = vadd.f32 %v1220, %v1852
    %1854 = vmatprep.mubr.f32.mxu0 0.0
    %1855 = vmatmul.mubr.f32.gmra.mxu0 %v1242
    %v1856 = vpop.f32.mrf.mxu0
    %v1857 = vadd.f32 %v1225, %v1856
    %v1858 = vpop.f32.mrf.mxu0
    %v1859 = vadd.f32 %v1225, %v1858
    %1860 = vmatprep.mubr.f32.mxu0 0.0
    %1861 = vmatmul.mubr.f32.gmra.mxu0 %v1245
    %v1862 = vpop.f32.mrf.mxu0
    %v1863 = vadd.f32 %v1230, %v1862
    %v1864 = vpop.f32.mrf.mxu0
    %v1865 = vadd.f32 %v1230, %v1864
    %1866 = vmatprep.mubr.f32.mxu0 0.0
    %1867 = vmatmul.mubr.f32.gmra.mxu0 %v1248
    %v1868 = vpop.f32.mrf.mxu0
    %v1869 = vadd.f32 %v1235, %v1868
    %v1870 = vpop.f32.mrf.mxu0
    %v1871 = vadd.f32 %v1235, %v1870
    %1872 = vdwg.mxu0
    %1873 = vmatprep.subr.mxu0 0.0
    %1874 = vmatpush1.msra.mxu0 0.0
    %1875 = vmatprep.subr.mxu0 0.0
    %1876 = vmatpush1.msra.mxu0 0.0
    %1877 = vmatprep.subr.mxu0 0.0
    %1878 = vmatpush1.msra.mxu0 0.0
    %1879 = vmatprep.subr.mxu0 0.0
    %1880 = vmatpush1.msra.mxu0 0.0
    %1881 = vmatprep.subr.mxu0 0.0
    %1882 = vmatpush1.msra.mxu0 0.0
    %1883 = vmatprep.subr.mxu0 0.0
    %1884 = vmatpush1.msra.mxu0 0.0
    %1885 = vmatprep.subr.mxu0 0.0
    %1886 = vmatpush1.msra.mxu0 0.0
    %1887 = vmatprep.subr.mxu0 0.0
    %1888 = vmatpush1.msra.mxu0 0.0
    %1889 = vmatprep.subr.mxu0 0.0
    %1890 = vmatpush1.msra.mxu0 0.0
    %1891 = vmatprep.subr.mxu0 0.0
    %1892 = vmatpush1.msra.mxu0 0.0
    %1893 = vmatprep.subr.mxu0 0.0
    %1894 = vmatpush1.msra.mxu0 0.0
    %1895 = vmatprep.subr.mxu0 0.0
    %1896 = vmatpush1.msra.mxu0 0.0
    %1897 = vmatprep.subr.mxu0 %v1208
    %1898 = vmatpush1.msra.mxu0 %v1207
    %1899 = vmatprep.subr.mxu0 %v1192
    %1900 = vmatpush1.msra.mxu0 %v1191
    %1901 = vmatprep.subr.mxu0 %v1176
    %1902 = vmatpush1.msra.mxu0 %v1175
    %1903 = vmatprep.subr.mxu0 %v1160
    %1904 = vmatpush1.msra.mxu0 %v1159
    %1905 = vmatprep.subr.mxu0 0.0
    %1906 = vmatpush2.msra.mxu0 0.0
    %1907 = vmatprep.subr.mxu0 0.0
    %1908 = vmatpush2.msra.mxu0 0.0
    %1909 = vmatprep.subr.mxu0 0.0
    %1910 = vmatpush2.msra.mxu0 0.0
    %1911 = vmatprep.subr.mxu0 0.0
    %1912 = vmatpush2.msra.mxu0 0.0
    %1913 = vmatprep.subr.mxu0 0.0
    %1914 = vmatpush2.msra.mxu0 0.0
    %1915 = vmatprep.subr.mxu0 0.0
    %1916 = vmatpush2.msra.mxu0 0.0
    %1917 = vmatprep.subr.mxu0 0.0
    %1918 = vmatpush2.msra.mxu0 0.0
    %1919 = vmatprep.subr.mxu0 0.0
    %1920 = vmatpush2.msra.mxu0 0.0
    %1921 = vmatprep.subr.mxu0 0.0
    %1922 = vmatpush2.msra.mxu0 0.0
    %1923 = vmatprep.subr.mxu0 0.0
    %1924 = vmatpush2.msra.mxu0 0.0
    %1925 = vmatprep.subr.mxu0 0.0
    %1926 = vmatpush2.msra.mxu0 0.0
    %1927 = vmatprep.subr.mxu0 0.0
    %1928 = vmatpush2.msra.mxu0 0.0
    %1929 = vmatprep.subr.mxu0 0.0
    %1930 = vmatpush2.msra.mxu0 0.0
    %1931 = vmatprep.subr.mxu0 0.0
    %1932 = vmatpush2.msra.mxu0 0.0
    %1933 = vmatprep.subr.mxu0 0.0
    %1934 = vmatpush2.msra.mxu0 0.0
    %1935 = vmatprep.subr.mxu0 0.0
    %1936 = vmatpush2.msra.mxu0 0.0
    %1937 = vmatprep.mubr.f32.mxu0 0.0
    %1938 = vmatmul.mubr.f32.gmra.mxu0 %v1239
    %v1939 = vpop.f32.mrf.mxu0
    %v1940 = vadd.f32 %v1220, %v1939
    %v1941 = vpop.f32.mrf.mxu0
    %v1942 = vadd.f32 %v1220, %v1941
    %1943 = vmatprep.mubr.f32.mxu0 0.0
    %1944 = vmatmul.mubr.f32.gmra.mxu0 %v1242
    %v1945 = vpop.f32.mrf.mxu0
    %v1946 = vadd.f32 %v1225, %v1945
    %v1947 = vpop.f32.mrf.mxu0
    %v1948 = vadd.f32 %v1225, %v1947
    %1949 = vmatprep.mubr.f32.mxu0 0.0
    %1950 = vmatmul.mubr.f32.gmra.mxu0 %v1245
    %v1951 = vpop.f32.mrf.mxu0
    %v1952 = vadd.f32 %v1230, %v1951
    %v1953 = vpop.f32.mrf.mxu0
    %v1954 = vadd.f32 %v1230, %v1953
    %1955 = vmatprep.mubr.f32.mxu0 0.0
    %1956 = vmatmul.mubr.f32.gmra.mxu0 %v1248
    %v1957 = vpop.f32.mrf.mxu0
    %v1958 = vadd.f32 %v1235, %v1957
    %v1959 = vpop.f32.mrf.mxu0
    %v1960 = vadd.f32 %v1235, %v1959
    %1961 = vdwg.mxu0
    %v1962 = vmax.f32 %v1317, 0.0
    %v1963 = vmax.f32 %v1319, 0.0
    %v1964 = vmax.f32 %v1406, 0.0
    %v1965 = vmax.f32 %v1408, 0.0
    %v1966 = vmax.f32 %v1495, 0.0
    %v1967 = vmax.f32 %v1497, 0.0
    %v1968 = vmax.f32 %v1584, 0.0
    %v1969 = vmax.f32 %v1586, 0.0
    %v1970 = vmax.f32 %v1673, 0.0
    %v1971 = vmax.f32 %v1675, 0.0
    %v1972 = vmax.f32 %v1762, 0.0
    %v1973 = vmax.f32 %v1764, 0.0
    %v1974 = vmax.f32 %v1851, 0.0
    %v1975 = vmax.f32 %v1853, 0.0
    %v1976 = vmax.f32 %v1940, 0.0
    %v1977 = vmax.f32 %v1942, 0.0
    %v1978 = vmax.f32 %v1323, 0.0
    %v1979 = vmax.f32 %v1325, 0.0
    %v1980 = vmax.f32 %v1412, 0.0
    %v1981 = vmax.f32 %v1414, 0.0
    %v1982 = vmax.f32 %v1501, 0.0
    %v1983 = vmax.f32 %v1503, 0.0
    %v1984 = vmax.f32 %v1590, 0.0
    %v1985 = vmax.f32 %v1592, 0.0
    %v1986 = vmax.f32 %v1679, 0.0
    %v1987 = vmax.f32 %v1681, 0.0
    %v1988 = vmax.f32 %v1768, 0.0
    %v1989 = vmax.f32 %v1770, 0.0
    %v1990 = vmax.f32 %v1857, 0.0
    %v1991 = vmax.f32 %v1859, 0.0
    %v1992 = vmax.f32 %v1946, 0.0
    %v1993 = vmax.f32 %v1948, 0.0
    %v1994 = vmax.f32 %v1329, 0.0
    %v1995 = vmax.f32 %v1331, 0.0
    %v1996 = vmax.f32 %v1418, 0.0
    %v1997 = vmax.f32 %v1420, 0.0
    %v1998 = vmax.f32 %v1507, 0.0
    %v1999 = vmax.f32 %v1509, 0.0
    %v2000 = vmax.f32 %v1596, 0.0
    %v2001 = vmax.f32 %v1598, 0.0
    %v2002 = vmax.f32 %v1685, 0.0
    %v2003 = vmax.f32 %v1687, 0.0
    %v2004 = vmax.f32 %v1774, 0.0
    %v2005 = vmax.f32 %v1776, 0.0
    %v2006 = vmax.f32 %v1863, 0.0
    %v2007 = vmax.f32 %v1865, 0.0
    %v2008 = vmax.f32 %v1952, 0.0
    %v2009 = vmax.f32 %v1954, 0.0
    %v2010 = vmax.f32 %v1335, 0.0
    %v2011 = vmax.f32 %v1337, 0.0
    %v2012 = vmax.f32 %v1424, 0.0
    %v2013 = vmax.f32 %v1426, 0.0
    %v2014 = vmax.f32 %v1513, 0.0
    %v2015 = vmax.f32 %v1515, 0.0
    %v2016 = vmax.f32 %v1602, 0.0
    %v2017 = vmax.f32 %v1604, 0.0
    %v2018 = vmax.f32 %v1691, 0.0
    %v2019 = vmax.f32 %v1693, 0.0
    %v2020 = vmax.f32 %v1780, 0.0
    %v2021 = vmax.f32 %v1782, 0.0
    %v2022 = vmax.f32 %v1869, 0.0
    %v2023 = vmax.f32 %v1871, 0.0
    %v2024 = vmax.f32 %v1958, 0.0
    %v2025 = vmax.f32 %v1960, 0.0
    %v2026 = vld [vmem:[%s6] sm:$0xf]
    %v2027 = vld [vmem:[%s7] sm:$0xf]
    %2029 = vset.pattern.permute.xlu0 0
    %2030 = vperm.xlu0 %2029, %v2027
    %v2031 = vpop.permute.xlu0 %2030
    %v2034 = vsel %vm1237, %v2026, 0
    %2036 = vmatprep.subr.mxu0 0.0
    %2037 = vmatpush1.msra.mxu0 0.0
    %2038 = vmatprep.subr.mxu0 0.0
    %2039 = vmatpush1.msra.mxu0 0.0
    %2040 = vmatprep.subr.mxu0 0.0
    %2041 = vmatpush1.msra.mxu0 0.0
    %2042 = vmatprep.subr.mxu0 0.0
    %2043 = vmatpush1.msra.mxu0 0.0
    %2044 = vmatprep.subr.mxu0 0.0
    %2045 = vmatpush1.msra.mxu0 0.0
    %2046 = vmatprep.subr.mxu0 0.0
    %2047 = vmatpush1.msra.mxu0 0.0
    %2048 = vmatprep.subr.mxu0 0.0
    %2049 = vmatpush1.msra.mxu0 0.0
    %2050 = vmatprep.subr.mxu0 0.0
    %2051 = vmatpush1.msra.mxu0 0.0
    %2052 = vmatprep.subr.mxu0 0.0
    %2053 = vmatpush1.msra.mxu0 0.0
    %2054 = vmatprep.subr.mxu0 0.0
    %2055 = vmatpush1.msra.mxu0 0.0
    %2056 = vmatprep.subr.mxu0 0.0
    %2057 = vmatpush1.msra.mxu0 0.0
    %2058 = vmatprep.subr.mxu0 0.0
    %2059 = vmatpush1.msra.mxu0 0.0
    %2060 = vmatprep.subr.mxu0 %v2011
    %2061 = vmatpush1.msra.mxu0 %v2010
    %2062 = vmatprep.subr.mxu0 %v1995
    %2063 = vmatpush1.msra.mxu0 %v1994
    %2064 = vmatprep.subr.mxu0 %v1979
    %2065 = vmatpush1.msra.mxu0 %v1978
    %2066 = vmatprep.subr.mxu0 %v1963
    %2067 = vmatpush1.msra.mxu0 %v1962
    %2068 = vmatprep.subr.mxu0 0.0
    %2069 = vmatpush2.msra.mxu0 0.0
    %2070 = vmatprep.subr.mxu0 0.0
    %2071 = vmatpush2.msra.mxu0 0.0
    %2072 = vmatprep.subr.mxu0 0.0
    %2073 = vmatpush2.msra.mxu0 0.0
    %2074 = vmatprep.subr.mxu0 0.0
    %2075 = vmatpush2.msra.mxu0 0.0
    %2076 = vmatprep.subr.mxu0 0.0
    %2077 = vmatpush2.msra.mxu0 0.0
    %2078 = vmatprep.subr.mxu0 0.0
    %2079 = vmatpush2.msra.mxu0 0.0
    %2080 = vmatprep.subr.mxu0 0.0
    %2081 = vmatpush2.msra.mxu0 0.0
    %2082 = vmatprep.subr.mxu0 0.0
    %2083 = vmatpush2.msra.mxu0 0.0
    %2084 = vmatprep.subr.mxu0 0.0
    %2085 = vmatpush2.msra.mxu0 0.0
    %2086 = vmatprep.subr.mxu0 0.0
    %2087 = vmatpush2.msra.mxu0 0.0
    %2088 = vmatprep.subr.mxu0 0.0
    %2089 = vmatpush2.msra.mxu0 0.0
    %2090 = vmatprep.subr.mxu0 0.0
    %2091 = vmatpush2.msra.mxu0 0.0
    %2092 = vmatprep.subr.mxu0 0.0
    %2093 = vmatpush2.msra.mxu0 0.0
    %2094 = vmatprep.subr.mxu0 0.0
    %2095 = vmatpush2.msra.mxu0 0.0
    %2096 = vmatprep.subr.mxu0 0.0
    %2097 = vmatpush2.msra.mxu0 0.0
    %2098 = vmatprep.subr.mxu0 0.0
    %2099 = vmatpush2.msra.mxu0 0.0
    %2100 = vmatprep.mubr.f32.mxu0 0.0
    %2101 = vmatmul.mubr.f32.gmra.mxu0 %v2034
    %v2102 = vpop.f32.mrf.mxu0
    %v2103 = vadd.f32 %v2031, %v2102
    %v2104 = vpop.f32.mrf.mxu0
    %v2105 = vadd.f32 %v2031, %v2104
    %2106 = vdwg.mxu0
    %2107 = vmatprep.subr.mxu0 0.0
    %2108 = vmatpush1.msra.mxu0 0.0
    %2109 = vmatprep.subr.mxu0 0.0
    %2110 = vmatpush1.msra.mxu0 0.0
    %2111 = vmatprep.subr.mxu0 0.0
    %2112 = vmatpush1.msra.mxu0 0.0
    %2113 = vmatprep.subr.mxu0 0.0
    %2114 = vmatpush1.msra.mxu0 0.0
    %2115 = vmatprep.subr.mxu0 0.0
    %2116 = vmatpush1.msra.mxu0 0.0
    %2117 = vmatprep.subr.mxu0 0.0
    %2118 = vmatpush1.msra.mxu0 0.0
    %2119 = vmatprep.subr.mxu0 0.0
    %2120 = vmatpush1.msra.mxu0 0.0
    %2121 = vmatprep.subr.mxu0 0.0
    %2122 = vmatpush1.msra.mxu0 0.0
    %2123 = vmatprep.subr.mxu0 0.0
    %2124 = vmatpush1.msra.mxu0 0.0
    %2125 = vmatprep.subr.mxu0 0.0
    %2126 = vmatpush1.msra.mxu0 0.0
    %2127 = vmatprep.subr.mxu0 0.0
    %2128 = vmatpush1.msra.mxu0 0.0
    %2129 = vmatprep.subr.mxu0 0.0
    %2130 = vmatpush1.msra.mxu0 0.0
    %2131 = vmatprep.subr.mxu0 %v2013
    %2132 = vmatpush1.msra.mxu0 %v2012
    %2133 = vmatprep.subr.mxu0 %v1997
    %2134 = vmatpush1.msra.mxu0 %v1996
    %2135 = vmatprep.subr.mxu0 %v1981
    %2136 = vmatpush1.msra.mxu0 %v1980
    %2137 = vmatprep.subr.mxu0 %v1965
    %2138 = vmatpush1.msra.mxu0 %v1964
    %2139 = vmatprep.subr.mxu0 0.0
    %2140 = vmatpush2.msra.mxu0 0.0
    %2141 = vmatprep.subr.mxu0 0.0
    %2142 = vmatpush2.msra.mxu0 0.0
    %2143 = vmatprep.subr.mxu0 0.0
    %2144 = vmatpush2.msra.mxu0 0.0
    %2145 = vmatprep.subr.mxu0 0.0
    %2146 = vmatpush2.msra.mxu0 0.0
    %2147 = vmatprep.subr.mxu0 0.0
    %2148 = vmatpush2.msra.mxu0 0.0
    %2149 = vmatprep.subr.mxu0 0.0
    %2150 = vmatpush2.msra.mxu0 0.0
    %2151 = vmatprep.subr.mxu0 0.0
    %2152 = vmatpush2.msra.mxu0 0.0
    %2153 = vmatprep.subr.mxu0 0.0
    %2154 = vmatpush2.msra.mxu0 0.0
    %2155 = vmatprep.subr.mxu0 0.0
    %2156 = vmatpush2.msra.mxu0 0.0
    %2157 = vmatprep.subr.mxu0 0.0
    %2158 = vmatpush2.msra.mxu0 0.0
    %2159 = vmatprep.subr.mxu0 0.0
    %2160 = vmatpush2.msra.mxu0 0.0
    %2161 = vmatprep.subr.mxu0 0.0
    %2162 = vmatpush2.msra.mxu0 0.0
    %2163 = vmatprep.subr.mxu0 0.0
    %2164 = vmatpush2.msra.mxu0 0.0
    %2165 = vmatprep.subr.mxu0 0.0
    %2166 = vmatpush2.msra.mxu0 0.0
    %2167 = vmatprep.subr.mxu0 0.0
    %2168 = vmatpush2.msra.mxu0 0.0
    %2169 = vmatprep.subr.mxu0 0.0
    %2170 = vmatpush2.msra.mxu0 0.0
    %2171 = vmatprep.mubr.f32.mxu0 0.0
    %2172 = vmatmul.mubr.f32.gmra.mxu0 %v2034
    %v2173 = vpop.f32.mrf.mxu0
    %v2174 = vadd.f32 %v2031, %v2173
    %v2175 = vpop.f32.mrf.mxu0
    %v2176 = vadd.f32 %v2031, %v2175
    %2177 = vdwg.mxu0
    %2178 = vmatprep.subr.mxu0 0.0
    %2179 = vmatpush1.msra.mxu0 0.0
    %2180 = vmatprep.subr.mxu0 0.0
    %2181 = vmatpush1.msra.mxu0 0.0
    %2182 = vmatprep.subr.mxu0 0.0
    %2183 = vmatpush1.msra.mxu0 0.0
    %2184 = vmatprep.subr.mxu0 0.0
    %2185 = vmatpush1.msra.mxu0 0.0
    %2186 = vmatprep.subr.mxu0 0.0
    %2187 = vmatpush1.msra.mxu0 0.0
    %2188 = vmatprep.subr.mxu0 0.0
    %2189 = vmatpush1.msra.mxu0 0.0
    %2190 = vmatprep.subr.mxu0 0.0
    %2191 = vmatpush1.msra.mxu0 0.0
    %2192 = vmatprep.subr.mxu0 0.0
    %2193 = vmatpush1.msra.mxu0 0.0
    %2194 = vmatprep.subr.mxu0 0.0
    %2195 = vmatpush1.msra.mxu0 0.0
    %2196 = vmatprep.subr.mxu0 0.0
    %2197 = vmatpush1.msra.mxu0 0.0
    %2198 = vmatprep.subr.mxu0 0.0
    %2199 = vmatpush1.msra.mxu0 0.0
    %2200 = vmatprep.subr.mxu0 0.0
    %2201 = vmatpush1.msra.mxu0 0.0
    %2202 = vmatprep.subr.mxu0 %v2015
    %2203 = vmatpush1.msra.mxu0 %v2014
    %2204 = vmatprep.subr.mxu0 %v1999
    %2205 = vmatpush1.msra.mxu0 %v1998
    %2206 = vmatprep.subr.mxu0 %v1983
    %2207 = vmatpush1.msra.mxu0 %v1982
    %2208 = vmatprep.subr.mxu0 %v1967
    %2209 = vmatpush1.msra.mxu0 %v1966
    %2210 = vmatprep.subr.mxu0 0.0
    %2211 = vmatpush2.msra.mxu0 0.0
    %2212 = vmatprep.subr.mxu0 0.0
    %2213 = vmatpush2.msra.mxu0 0.0
    %2214 = vmatprep.subr.mxu0 0.0
    %2215 = vmatpush2.msra.mxu0 0.0
    %2216 = vmatprep.subr.mxu0 0.0
    %2217 = vmatpush2.msra.mxu0 0.0
    %2218 = vmatprep.subr.mxu0 0.0
    %2219 = vmatpush2.msra.mxu0 0.0
    %2220 = vmatprep.subr.mxu0 0.0
    %2221 = vmatpush2.msra.mxu0 0.0
    %2222 = vmatprep.subr.mxu0 0.0
    %2223 = vmatpush2.msra.mxu0 0.0
    %2224 = vmatprep.subr.mxu0 0.0
    %2225 = vmatpush2.msra.mxu0 0.0
    %2226 = vmatprep.subr.mxu0 0.0
    %2227 = vmatpush2.msra.mxu0 0.0
    %2228 = vmatprep.subr.mxu0 0.0
    %2229 = vmatpush2.msra.mxu0 0.0
    %2230 = vmatprep.subr.mxu0 0.0
    %2231 = vmatpush2.msra.mxu0 0.0
    %2232 = vmatprep.subr.mxu0 0.0
    %2233 = vmatpush2.msra.mxu0 0.0
    %2234 = vmatprep.subr.mxu0 0.0
    %2235 = vmatpush2.msra.mxu0 0.0
    %2236 = vmatprep.subr.mxu0 0.0
    %2237 = vmatpush2.msra.mxu0 0.0
    %2238 = vmatprep.subr.mxu0 0.0
    %2239 = vmatpush2.msra.mxu0 0.0
    %2240 = vmatprep.subr.mxu0 0.0
    %2241 = vmatpush2.msra.mxu0 0.0
    %2242 = vmatprep.mubr.f32.mxu0 0.0
    %2243 = vmatmul.mubr.f32.gmra.mxu0 %v2034
    %v2244 = vpop.f32.mrf.mxu0
    %v2245 = vadd.f32 %v2031, %v2244
    %v2246 = vpop.f32.mrf.mxu0
    %v2247 = vadd.f32 %v2031, %v2246
    %2248 = vdwg.mxu0
    %2249 = vmatprep.subr.mxu0 0.0
    %2250 = vmatpush1.msra.mxu0 0.0
    %2251 = vmatprep.subr.mxu0 0.0
    %2252 = vmatpush1.msra.mxu0 0.0
    %2253 = vmatprep.subr.mxu0 0.0
    %2254 = vmatpush1.msra.mxu0 0.0
    %2255 = vmatprep.subr.mxu0 0.0
    %2256 = vmatpush1.msra.mxu0 0.0
    %2257 = vmatprep.subr.mxu0 0.0
    %2258 = vmatpush1.msra.mxu0 0.0
    %2259 = vmatprep.subr.mxu0 0.0
    %2260 = vmatpush1.msra.mxu0 0.0
    %2261 = vmatprep.subr.mxu0 0.0
    %2262 = vmatpush1.msra.mxu0 0.0
    %2263 = vmatprep.subr.mxu0 0.0
    %2264 = vmatpush1.msra.mxu0 0.0
    %2265 = vmatprep.subr.mxu0 0.0
    %2266 = vmatpush1.msra.mxu0 0.0
    %2267 = vmatprep.subr.mxu0 0.0
    %2268 = vmatpush1.msra.mxu0 0.0
    %2269 = vmatprep.subr.mxu0 0.0
    %2270 = vmatpush1.msra.mxu0 0.0
    %2271 = vmatprep.subr.mxu0 0.0
    %2272 = vmatpush1.msra.mxu0 0.0
    %2273 = vmatprep.subr.mxu0 %v2017
    %2274 = vmatpush1.msra.mxu0 %v2016
    %2275 = vmatprep.subr.mxu0 %v2001
    %2276 = vmatpush1.msra.mxu0 %v2000
    %2277 = vmatprep.subr.mxu0 %v1985
    %2278 = vmatpush1.msra.mxu0 %v1984
    %2279 = vmatprep.subr.mxu0 %v1969
    %2280 = vmatpush1.msra.mxu0 %v1968
    %2281 = vmatprep.subr.mxu0 0.0
    %2282 = vmatpush2.msra.mxu0 0.0
    %2283 = vmatprep.subr.mxu0 0.0
    %2284 = vmatpush2.msra.mxu0 0.0
    %2285 = vmatprep.subr.mxu0 0.0
    %2286 = vmatpush2.msra.mxu0 0.0
    %2287 = vmatprep.subr.mxu0 0.0
    %2288 = vmatpush2.msra.mxu0 0.0
    %2289 = vmatprep.subr.mxu0 0.0
    %2290 = vmatpush2.msra.mxu0 0.0
    %2291 = vmatprep.subr.mxu0 0.0
    %2292 = vmatpush2.msra.mxu0 0.0
    %2293 = vmatprep.subr.mxu0 0.0
    %2294 = vmatpush2.msra.mxu0 0.0
    %2295 = vmatprep.subr.mxu0 0.0
    %2296 = vmatpush2.msra.mxu0 0.0
    %2297 = vmatprep.subr.mxu0 0.0
    %2298 = vmatpush2.msra.mxu0 0.0
    %2299 = vmatprep.subr.mxu0 0.0
    %2300 = vmatpush2.msra.mxu0 0.0
    %2301 = vmatprep.subr.mxu0 0.0
    %2302 = vmatpush2.msra.mxu0 0.0
    %2303 = vmatprep.subr.mxu0 0.0
    %2304 = vmatpush2.msra.mxu0 0.0
    %2305 = vmatprep.subr.mxu0 0.0
    %2306 = vmatpush2.msra.mxu0 0.0
    %2307 = vmatprep.subr.mxu0 0.0
    %2308 = vmatpush2.msra.mxu0 0.0
    %2309 = vmatprep.subr.mxu0 0.0
    %2310 = vmatpush2.msra.mxu0 0.0
    %2311 = vmatprep.subr.mxu0 0.0
    %2312 = vmatpush2.msra.mxu0 0.0
    %2313 = vmatprep.mubr.f32.mxu0 0.0
    %2314 = vmatmul.mubr.f32.gmra.mxu0 %v2034
    %v2315 = vpop.f32.mrf.mxu0
    %v2316 = vadd.f32 %v2031, %v2315
    %v2317 = vpop.f32.mrf.mxu0
    %v2318 = vadd.f32 %v2031, %v2317
    %2319 = vdwg.mxu0
    %2320 = vmatprep.subr.mxu0 0.0
    %2321 = vmatpush1.msra.mxu0 0.0
    %2322 = vmatprep.subr.mxu0 0.0
    %2323 = vmatpush1.msra.mxu0 0.0
    %2324 = vmatprep.subr.mxu0 0.0
    %2325 = vmatpush1.msra.mxu0 0.0
    %2326 = vmatprep.subr.mxu0 0.0
    %2327 = vmatpush1.msra.mxu0 0.0
    %2328 = vmatprep.subr.mxu0 0.0
    %2329 = vmatpush1.msra.mxu0 0.0
    %2330 = vmatprep.subr.mxu0 0.0
    %2331 = vmatpush1.msra.mxu0 0.0
    %2332 = vmatprep.subr.mxu0 0.0
    %2333 = vmatpush1.msra.mxu0 0.0
    %2334 = vmatprep.subr.mxu0 0.0
    %2335 = vmatpush1.msra.mxu0 0.0
    %2336 = vmatprep.subr.mxu0 0.0
    %2337 = vmatpush1.msra.mxu0 0.0
    %2338 = vmatprep.subr.mxu0 0.0
    %2339 = vmatpush1.msra.mxu0 0.0
    %2340 = vmatprep.subr.mxu0 0.0
    %2341 = vmatpush1.msra.mxu0 0.0
    %2342 = vmatprep.subr.mxu0 0.0
    %2343 = vmatpush1.msra.mxu0 0.0
    %2344 = vmatprep.subr.mxu0 %v2019
    %2345 = vmatpush1.msra.mxu0 %v2018
    %2346 = vmatprep.subr.mxu0 %v2003
    %2347 = vmatpush1.msra.mxu0 %v2002
    %2348 = vmatprep.subr.mxu0 %v1987
    %2349 = vmatpush1.msra.mxu0 %v1986
    %2350 = vmatprep.subr.mxu0 %v1971
    %2351 = vmatpush1.msra.mxu0 %v1970
    %2352 = vmatprep.subr.mxu0 0.0
    %2353 = vmatpush2.msra.mxu0 0.0
    %2354 = vmatprep.subr.mxu0 0.0
    %2355 = vmatpush2.msra.mxu0 0.0
    %2356 = vmatprep.subr.mxu0 0.0
    %2357 = vmatpush2.msra.mxu0 0.0
    %2358 = vmatprep.subr.mxu0 0.0
    %2359 = vmatpush2.msra.mxu0 0.0
    %2360 = vmatprep.subr.mxu0 0.0
    %2361 = vmatpush2.msra.mxu0 0.0
    %2362 = vmatprep.subr.mxu0 0.0
    %2363 = vmatpush2.msra.mxu0 0.0
    %2364 = vmatprep.subr.mxu0 0.0
    %2365 = vmatpush2.msra.mxu0 0.0
    %2366 = vmatprep.subr.mxu0 0.0
    %2367 = vmatpush2.msra.mxu0 0.0
    %2368 = vmatprep.subr.mxu0 0.0
    %2369 = vmatpush2.msra.mxu0 0.0
    %2370 = vmatprep.subr.mxu0 0.0
    %2371 = vmatpush2.msra.mxu0 0.0
    %2372 = vmatprep.subr.mxu0 0.0
    %2373 = vmatpush2.msra.mxu0 0.0
    %2374 = vmatprep.subr.mxu0 0.0
    %2375 = vmatpush2.msra.mxu0 0.0
    %2376 = vmatprep.subr.mxu0 0.0
    %2377 = vmatpush2.msra.mxu0 0.0
    %2378 = vmatprep.subr.mxu0 0.0
    %2379 = vmatpush2.msra.mxu0 0.0
    %2380 = vmatprep.subr.mxu0 0.0
    %2381 = vmatpush2.msra.mxu0 0.0
    %2382 = vmatprep.subr.mxu0 0.0
    %2383 = vmatpush2.msra.mxu0 0.0
    %2384 = vmatprep.mubr.f32.mxu0 0.0
    %2385 = vmatmul.mubr.f32.gmra.mxu0 %v2034
    %v2386 = vpop.f32.mrf.mxu0
    %v2387 = vadd.f32 %v2031, %v2386
    %v2388 = vpop.f32.mrf.mxu0
    %v2389 = vadd.f32 %v2031, %v2388
    %2390 = vdwg.mxu0
    %2391 = vmatprep.subr.mxu0 0.0
    %2392 = vmatpush1.msra.mxu0 0.0
    %2393 = vmatprep.subr.mxu0 0.0
    %2394 = vmatpush1.msra.mxu0 0.0
    %2395 = vmatprep.subr.mxu0 0.0
    %2396 = vmatpush1.msra.mxu0 0.0
    %2397 = vmatprep.subr.mxu0 0.0
    %2398 = vmatpush1.msra.mxu0 0.0
    %2399 = vmatprep.subr.mxu0 0.0
    %2400 = vmatpush1.msra.mxu0 0.0
    %2401 = vmatprep.subr.mxu0 0.0
    %2402 = vmatpush1.msra.mxu0 0.0
    %2403 = vmatprep.subr.mxu0 0.0
    %2404 = vmatpush1.msra.mxu0 0.0
    %2405 = vmatprep.subr.mxu0 0.0
    %2406 = vmatpush1.msra.mxu0 0.0
    %2407 = vmatprep.subr.mxu0 0.0
    %2408 = vmatpush1.msra.mxu0 0.0
    %2409 = vmatprep.subr.mxu0 0.0
    %2410 = vmatpush1.msra.mxu0 0.0
    %2411 = vmatprep.subr.mxu0 0.0
    %2412 = vmatpush1.msra.mxu0 0.0
    %2413 = vmatprep.subr.mxu0 0.0
    %2414 = vmatpush1.msra.mxu0 0.0
    %2415 = vmatprep.subr.mxu0 %v2021
    %2416 = vmatpush1.msra.mxu0 %v2020
    %2417 = vmatprep.subr.mxu0 %v2005
    %2418 = vmatpush1.msra.mxu0 %v2004
    %2419 = vmatprep.subr.mxu0 %v1989
    %2420 = vmatpush1.msra.mxu0 %v1988
    %2421 = vmatprep.subr.mxu0 %v1973
    %2422 = vmatpush1.msra.mxu0 %v1972
    %2423 = vmatprep.subr.mxu0 0.0
    %2424 = vmatpush2.msra.mxu0 0.0
    %2425 = vmatprep.subr.mxu0 0.0
    %2426 = vmatpush2.msra.mxu0 0.0
    %2427 = vmatprep.subr.mxu0 0.0
    %2428 = vmatpush2.msra.mxu0 0.0
    %2429 = vmatprep.subr.mxu0 0.0
    %2430 = vmatpush2.msra.mxu0 0.0
    %2431 = vmatprep.subr.mxu0 0.0
    %2432 = vmatpush2.msra.mxu0 0.0
    %2433 = vmatprep.subr.mxu0 0.0
    %2434 = vmatpush2.msra.mxu0 0.0
    %2435 = vmatprep.subr.mxu0 0.0
    %2436 = vmatpush2.msra.mxu0 0.0
    %2437 = vmatprep.subr.mxu0 0.0
    %2438 = vmatpush2.msra.mxu0 0.0
    %2439 = vmatprep.subr.mxu0 0.0
    %2440 = vmatpush2.msra.mxu0 0.0
    %2441 = vmatprep.subr.mxu0 0.0
    %2442 = vmatpush2.msra.mxu0 0.0
    %2443 = vmatprep.subr.mxu0 0.0
    %2444 = vmatpush2.msra.mxu0 0.0
    %2445 = vmatprep.subr.mxu0 0.0
    %2446 = vmatpush2.msra.mxu0 0.0
    %2447 = vmatprep.subr.mxu0 0.0
    %2448 = vmatpush2.msra.mxu0 0.0
    %2449 = vmatprep.subr.mxu0 0.0
    %2450 = vmatpush2.msra.mxu0 0.0
    %2451 = vmatprep.subr.mxu0 0.0
    %2452 = vmatpush2.msra.mxu0 0.0
    %2453 = vmatprep.subr.mxu0 0.0
    %2454 = vmatpush2.msra.mxu0 0.0
    %2455 = vmatprep.mubr.f32.mxu0 0.0
    %2456 = vmatmul.mubr.f32.gmra.mxu0 %v2034
    %v2457 = vpop.f32.mrf.mxu0
    %v2458 = vadd.f32 %v2031, %v2457
    %v2459 = vpop.f32.mrf.mxu0
    %v2460 = vadd.f32 %v2031, %v2459
    %2461 = vdwg.mxu0
    %2462 = vmatprep.subr.mxu0 0.0
    %2463 = vmatpush1.msra.mxu0 0.0
    %2464 = vmatprep.subr.mxu0 0.0
    %2465 = vmatpush1.msra.mxu0 0.0
    %2466 = vmatprep.subr.mxu0 0.0
    %2467 = vmatpush1.msra.mxu0 0.0
    %2468 = vmatprep.subr.mxu0 0.0
    %2469 = vmatpush1.msra.mxu0 0.0
    %2470 = vmatprep.subr.mxu0 0.0
    %2471 = vmatpush1.msra.mxu0 0.0
    %2472 = vmatprep.subr.mxu0 0.0
    %2473 = vmatpush1.msra.mxu0 0.0
    %2474 = vmatprep.subr.mxu0 0.0
    %2475 = vmatpush1.msra.mxu0 0.0
    %2476 = vmatprep.subr.mxu0 0.0
    %2477 = vmatpush1.msra.mxu0 0.0
    %2478 = vmatprep.subr.mxu0 0.0
    %2479 = vmatpush1.msra.mxu0 0.0
    %2480 = vmatprep.subr.mxu0 0.0
    %2481 = vmatpush1.msra.mxu0 0.0
    %2482 = vmatprep.subr.mxu0 0.0
    %2483 = vmatpush1.msra.mxu0 0.0
    %2484 = vmatprep.subr.mxu0 0.0
    %2485 = vmatpush1.msra.mxu0 0.0
    %2486 = vmatprep.subr.mxu0 %v2023
    %2487 = vmatpush1.msra.mxu0 %v2022
    %2488 = vmatprep.subr.mxu0 %v2007
    %2489 = vmatpush1.msra.mxu0 %v2006
    %2490 = vmatprep.subr.mxu0 %v1991
    %2491 = vmatpush1.msra.mxu0 %v1990
    %2492 = vmatprep.subr.mxu0 %v1975
    %2493 = vmatpush1.msra.mxu0 %v1974
    %2494 = vmatprep.subr.mxu0 0.0
    %2495 = vmatpush2.msra.mxu0 0.0
    %2496 = vmatprep.subr.mxu0 0.0
    %2497 = vmatpush2.msra.mxu0 0.0
    %2498 = vmatprep.subr.mxu0 0.0
    %2499 = vmatpush2.msra.mxu0 0.0
    %2500 = vmatprep.subr.mxu0 0.0
    %2501 = vmatpush2.msra.mxu0 0.0
    %2502 = vmatprep.subr.mxu0 0.0
    %2503 = vmatpush2.msra.mxu0 0.0
    %2504 = vmatprep.subr.mxu0 0.0
    %2505 = vmatpush2.msra.mxu0 0.0
    %2506 = vmatprep.subr.mxu0 0.0
    %2507 = vmatpush2.msra.mxu0 0.0
    %2508 = vmatprep.subr.mxu0 0.0
    %2509 = vmatpush2.msra.mxu0 0.0
    %2510 = vmatprep.subr.mxu0 0.0
    %2511 = vmatpush2.msra.mxu0 0.0
    %2512 = vmatprep.subr.mxu0 0.0
    %2513 = vmatpush2.msra.mxu0 0.0
    %2514 = vmatprep.subr.mxu0 0.0
    %2515 = vmatpush2.msra.mxu0 0.0
    %2516 = vmatprep.subr.mxu0 0.0
    %2517 = vmatpush2.msra.mxu0 0.0
    %2518 = vmatprep.subr.mxu0 0.0
    %2519 = vmatpush2.msra.mxu0 0.0
    %2520 = vmatprep.subr.mxu0 0.0
    %2521 = vmatpush2.msra.mxu0 0.0
    %2522 = vmatprep.subr.mxu0 0.0
    %2523 = vmatpush2.msra.mxu0 0.0
    %2524 = vmatprep.subr.mxu0 0.0
    %2525 = vmatpush2.msra.mxu0 0.0
    %2526 = vmatprep.mubr.f32.mxu0 0.0
    %2527 = vmatmul.mubr.f32.gmra.mxu0 %v2034
    %v2528 = vpop.f32.mrf.mxu0
    %v2529 = vadd.f32 %v2031, %v2528
    %v2530 = vpop.f32.mrf.mxu0
    %v2531 = vadd.f32 %v2031, %v2530
    %2532 = vdwg.mxu0
    %2533 = vmatprep.subr.mxu0 0.0
    %2534 = vmatpush1.msra.mxu0 0.0
    %2535 = vmatprep.subr.mxu0 0.0
    %2536 = vmatpush1.msra.mxu0 0.0
    %2537 = vmatprep.subr.mxu0 0.0
    %2538 = vmatpush1.msra.mxu0 0.0
    %2539 = vmatprep.subr.mxu0 0.0
    %2540 = vmatpush1.msra.mxu0 0.0
    %2541 = vmatprep.subr.mxu0 0.0
    %2542 = vmatpush1.msra.mxu0 0.0
    %2543 = vmatprep.subr.mxu0 0.0
    %2544 = vmatpush1.msra.mxu0 0.0
    %2545 = vmatprep.subr.mxu0 0.0
    %2546 = vmatpush1.msra.mxu0 0.0
    %2547 = vmatprep.subr.mxu0 0.0
    %2548 = vmatpush1.msra.mxu0 0.0
    %2549 = vmatprep.subr.mxu0 0.0
    %2550 = vmatpush1.msra.mxu0 0.0
    %2551 = vmatprep.subr.mxu0 0.0
    %2552 = vmatpush1.msra.mxu0 0.0
    %2553 = vmatprep.subr.mxu0 0.0
    %2554 = vmatpush1.msra.mxu0 0.0
    %2555 = vmatprep.subr.mxu0 0.0
    %2556 = vmatpush1.msra.mxu0 0.0
    %2557 = vmatprep.subr.mxu0 %v2025
    %2558 = vmatpush1.msra.mxu0 %v2024
    %2559 = vmatprep.subr.mxu0 %v2009
    %2560 = vmatpush1.msra.mxu0 %v2008
    %2561 = vmatprep.subr.mxu0 %v1993
    %2562 = vmatpush1.msra.mxu0 %v1992
    %2563 = vmatprep.subr.mxu0 %v1977
    %2564 = vmatpush1.msra.mxu0 %v1976
    %2565 = vmatprep.subr.mxu0 0.0
    %2566 = vmatpush2.msra.mxu0 0.0
    %2567 = vmatprep.subr.mxu0 0.0
    %2568 = vmatpush2.msra.mxu0 0.0
    %2569 = vmatprep.subr.mxu0 0.0
    %2570 = vmatpush2.msra.mxu0 0.0
    %2571 = vmatprep.subr.mxu0 0.0
    %2572 = vmatpush2.msra.mxu0 0.0
    %2573 = vmatprep.subr.mxu0 0.0
    %2574 = vmatpush2.msra.mxu0 0.0
    %2575 = vmatprep.subr.mxu0 0.0
    %2576 = vmatpush2.msra.mxu0 0.0
    %2577 = vmatprep.subr.mxu0 0.0
    %2578 = vmatpush2.msra.mxu0 0.0
    %2579 = vmatprep.subr.mxu0 0.0
    %2580 = vmatpush2.msra.mxu0 0.0
    %2581 = vmatprep.subr.mxu0 0.0
    %2582 = vmatpush2.msra.mxu0 0.0
    %2583 = vmatprep.subr.mxu0 0.0
    %2584 = vmatpush2.msra.mxu0 0.0
    %2585 = vmatprep.subr.mxu0 0.0
    %2586 = vmatpush2.msra.mxu0 0.0
    %2587 = vmatprep.subr.mxu0 0.0
    %2588 = vmatpush2.msra.mxu0 0.0
    %2589 = vmatprep.subr.mxu0 0.0
    %2590 = vmatpush2.msra.mxu0 0.0
    %2591 = vmatprep.subr.mxu0 0.0
    %2592 = vmatpush2.msra.mxu0 0.0
    %2593 = vmatprep.subr.mxu0 0.0
    %2594 = vmatpush2.msra.mxu0 0.0
    %2595 = vmatprep.subr.mxu0 0.0
    %2596 = vmatpush2.msra.mxu0 0.0
    %2597 = vmatprep.mubr.f32.mxu0 0.0
    %2598 = vmatmul.mubr.f32.gmra.mxu0 %v2034
    %v2599 = vpop.f32.mrf.mxu0
    %v2600 = vadd.f32 %v2031, %v2599
    %v2601 = vpop.f32.mrf.mxu0
    %v2602 = vadd.f32 %v2031, %v2601
    %2603 = vdwg.mxu0
    %2604 = vst [vmem:[#allocation2] sm:$0x7] %v327
    %2605 = vst [vmem:[#allocation2 + $0x8] sm:$0x7] %v328
    %2606 = vst [vmem:[#allocation2 + $0x10] sm:$0x7] %v329
    %2607 = vst [vmem:[#allocation2 + $0x18] sm:$0x7] %v330
    %2608 = vst [vmem:[#allocation2 + $0x20] sm:$0x7] %v331
    %2609 = vst [vmem:[#allocation2 + $0x28] sm:$0x7] %v332
    %2610 = vst [vmem:[#allocation2 + $0x30] sm:$0x7] %v333
    %2611 = vst [vmem:[#allocation2 + $0x38] sm:$0x7] %v334
    %2612 = vst [vmem:[#allocation2 + $0x40] sm:$0x7] %v335
    %2613 = vst [vmem:[#allocation2 + $0x48] sm:$0x7] %v336
    %2614 = vst [vmem:[#allocation2 + $0x50] sm:$0x7] %v337
    %2615 = vst [vmem:[#allocation2 + $0x58] sm:$0x7] %v338
    %2616 = vst [vmem:[#allocation2 + $0x60] sm:$0x7] %v339
    %2617 = vst [vmem:[#allocation2 + $0x68] sm:$0x7] %v340
    %2618 = vst [vmem:[#allocation2 + $0x70] sm:$0x7] %v341
    %2619 = vst [vmem:[#allocation2 + $0x78] sm:$0x7] %v342
    %v2636 = vrot.slane %v2103, 5
    %v2637 = vrot.slane %v2105, 5
    %v2638 = vrot.slane %v2174, 5
    %v2639 = vrot.slane %v2176, 5
    %v2640 = vrot.slane %v2245, 5
    %v2641 = vrot.slane %v2247, 5
    %v2642 = vrot.slane %v2316, 5
    %v2643 = vrot.slane %v2318, 5
    %v2644 = vrot.slane %v2387, 5
    %v2645 = vrot.slane %v2389, 5
    %v2646 = vrot.slane %v2458, 5
    %v2647 = vrot.slane %v2460, 5
    %v2648 = vrot.slane %v2529, 5
    %v2649 = vrot.slane %v2531, 5
    %v2650 = vrot.slane %v2600, 5
    %v2651 = vrot.slane %v2602, 5
    %2668 = vst [vmem:[#allocation2] sm:$0x78] %v2636
    %2669 = vst [vmem:[#allocation2 + $0x8] sm:$0x78] %v2637
    %2670 = vst [vmem:[#allocation2 + $0x10] sm:$0x78] %v2638
    %2671 = vst [vmem:[#allocation2 + $0x18] sm:$0x78] %v2639
    %2672 = vst [vmem:[#allocation2 + $0x20] sm:$0x78] %v2640
    %2673 = vst [vmem:[#allocation2 + $0x28] sm:$0x78] %v2641
    %2674 = vst [vmem:[#allocation2 + $0x30] sm:$0x78] %v2642
    %2675 = vst [vmem:[#allocation2 + $0x38] sm:$0x78] %v2643
    %2676 = vst [vmem:[#allocation2 + $0x40] sm:$0x78] %v2644
    %2677 = vst [vmem:[#allocation2 + $0x48] sm:$0x78] %v2645
    %2678 = vst [vmem:[#allocation2 + $0x50] sm:$0x78] %v2646
    %2679 = vst [vmem:[#allocation2 + $0x58] sm:$0x78] %v2647
    %2680 = vst [vmem:[#allocation2 + $0x60] sm:$0x78] %v2648
    %2681 = vst [vmem:[#allocation2 + $0x68] sm:$0x78] %v2649
    %2682 = vst [vmem:[#allocation2 + $0x70] sm:$0x78] %v2650
    %2683 = vst [vmem:[#allocation2 + $0x78] sm:$0x78] %v2651
    %v2700 = vcombine.high %v183, %v184
    %v2701 = vcombine.high %v185, %v186
    %v2702 = vcombine.high %v187, %v188
    %v2703 = vcombine.high %v189, %v190
    %v2705 = vunpack.c.l.s4 1966171168
    %v2706 = vunpack.c.0.s8 %v2705
    %v2707 = vlaneseq
    %v2708 = vshrl.u32 %v2707, 7
    %v2709 = vsub.s32 %v2706, %v2708
    %v2710 = vrot.slane %v2700, %v2709
    %v2712 = vunpack.c.l.s4 1966171168
    %v2713 = vunpack.c.0.s8 %v2712
    %v2714 = vlaneseq
    %v2715 = vshrl.u32 %v2714, 7
    %v2716 = vsub.s32 %v2713, %v2715
    %v2717 = vrot.slane %v2701, %v2716
    %v2719 = vunpack.c.l.s4 1966171168
    %v2720 = vunpack.c.0.s8 %v2719
    %v2721 = vlaneseq
    %v2722 = vshrl.u32 %v2721, 7
    %v2723 = vsub.s32 %v2720, %v2722
    %v2724 = vrot.slane %v2702, %v2723
    %v2726 = vunpack.c.l.s4 1966171168
    %v2727 = vunpack.c.0.s8 %v2726
    %v2728 = vlaneseq
    %v2729 = vshrl.u32 %v2728, 7
    %v2730 = vsub.s32 %v2727, %v2729
    %v2731 = vrot.slane %v2703, %v2730
    %v2732 = vcombine.low %v2710, %v2717
    %v2733 = vcombine.low %v2724, %v2731
    %v2735 = vunpack.c.l.s4 1966171168
    %v2736 = vunpack.c.0.s8 %v2735
    %v2737 = vlaneseq
    %v2738 = vshrl.u32 %v2737, 7
    %v2739 = vsub.s32 %v2736, %v2738
    %v2740 = vrot.slane %v2732, %v2739
    %v2742 = vunpack.c.l.s4 1966171168
    %v2743 = vunpack.c.0.s8 %v2742
    %v2744 = vlaneseq
    %v2745 = vshrl.u32 %v2744, 7
    %v2746 = vsub.s32 %v2743, %v2745
    %v2747 = vrot.slane %v2733, %v2746
    %v2748 = vcombine.high %v2740, %v2747
    %v2749 = vcombine.high %v191, %v192
    %v2750 = vcombine.high %v193, %v194
    %v2751 = vcombine.high %v195, %v196
    %v2752 = vcombine.high %v197, %v198
    %v2754 = vunpack.c.l.s4 1966171168
    %v2755 = vunpack.c.0.s8 %v2754
    %v2756 = vlaneseq
    %v2757 = vshrl.u32 %v2756, 7
    %v2758 = vsub.s32 %v2755, %v2757
    %v2759 = vrot.slane %v2749, %v2758
    %v2761 = vunpack.c.l.s4 1966171168
    %v2762 = vunpack.c.0.s8 %v2761
    %v2763 = vlaneseq
    %v2764 = vshrl.u32 %v2763, 7
    %v2765 = vsub.s32 %v2762, %v2764
    %v2766 = vrot.slane %v2750, %v2765
    %v2768 = vunpack.c.l.s4 1966171168
    %v2769 = vunpack.c.0.s8 %v2768
    %v2770 = vlaneseq
    %v2771 = vshrl.u32 %v2770, 7
    %v2772 = vsub.s32 %v2769, %v2771
    %v2773 = vrot.slane %v2751, %v2772
    %v2775 = vunpack.c.l.s4 1966171168
    %v2776 = vunpack.c.0.s8 %v2775
    %v2777 = vlaneseq
    %v2778 = vshrl.u32 %v2777, 7
    %v2779 = vsub.s32 %v2776, %v2778
    %v2780 = vrot.slane %v2752, %v2779
    %v2781 = vcombine.low %v2759, %v2766
    %v2782 = vcombine.low %v2773, %v2780
    %v2784 = vunpack.c.l.s4 1966171168
    %v2785 = vunpack.c.0.s8 %v2784
    %v2786 = vlaneseq
    %v2787 = vshrl.u32 %v2786, 7
    %v2788 = vsub.s32 %v2785, %v2787
    %v2789 = vrot.slane %v2781, %v2788
    %v2791 = vunpack.c.l.s4 1966171168
    %v2792 = vunpack.c.0.s8 %v2791
    %v2793 = vlaneseq
    %v2794 = vshrl.u32 %v2793, 7
    %v2795 = vsub.s32 %v2792, %v2794
    %v2796 = vrot.slane %v2782, %v2795
    %v2797 = vcombine.high %v2789, %v2796
    %s2800 = scalar_lea.vmem [#allocation2], 7
    %2801 = vst [vmem:[%s2800] ss:$8 sm:$0xf] %v2748
    %2802 = vst [vmem:[%s2800] ss:$8 sm:$0xf0] %v2748
    %s2803 = scalar_lea.vmem [#allocation2], 71
    %2804 = vst [vmem:[%s2803] ss:$8 sm:$0xf] %v2797
    %2805 = vst [vmem:[%s2803] ss:$8 sm:$0xf0] %v2797
    // Predicated region
    $region34: #{tpu_custom_call.1} parent=1 // pred_check
      _
    $region35: #{tpu_custom_call.1} parent=1 // pred_check_branch
      %2807 = sbr.rel (0) target = $region37
    $region36: #{tpu_custom_call.1} parent=1 // pred_region
      %s2809 = ssub.s32 2048, 2048
      %2810 = vsyncadd [#allocation3], %s2809
      %s2812 = sshll.u32 [#allocation2], 4
      %s2813 = int_to_ptr.vmem [resolvable:$true] %s2812
      %2815 = dma.vmem_to_hbm [thread:$0]  %s2813, 2048, %s8, [#allocation3]
    $region37: #{tpu_custom_call.1} parent=1 // pred_fallthru
      _
    // Predicated region
    $region38: #{tpu_custom_call.1} parent=1 // pred_check
      _
    $region39: #{tpu_custom_call.1} parent=1 // pred_check_branch
      %2817 = sbr.rel (0) target = $region41
    $region40: #{tpu_custom_call.1} parent=1 // pred_region
      %2818 = dma.done [#allocation3], 2048
    $region41: #{tpu_custom_call.1} parent=1 // pred_fallthru
      _
    %2819 = vsyncpa [#allocation3], 1

</llo_original>
